<compile_context>
chip_gen: v7x
topology: tpu7x:2x2x1
jax: 0.10.0
libtpu: 0.0.40
codegen_flags: <defaults>
</compile_context>

<pallas_src>
import math
import jax
import jax.numpy as jnp
from jax.experimental import pallas as pl
from jax.experimental.pallas import tpu as pltpu


def _round_up(v, m):
    return ((v + m - 1) // m) * m


def _pick_tk(Kp, cap=1024):
    """Largest multiple of 128 that divides Kp and is <= cap."""
    best = 128
    for mult in range(1, Kp // 128 + 1):
        cand = 128 * mult
        if cand > cap:
            break
        if Kp % cand == 0:
            best = cand
    return best


# --------------------------------------------------------------------------
# Kernel 1: fused ReLU -> bf16 matmul (im2col conv) -> per-M-tile BN partials
# grid = (j: C_out tiles [parallel], i: M tiles [parallel], k: K tiles [arbitrary])
# --------------------------------------------------------------------------
def _conv_relu_stats_kernel(x_ref, w_ref, y_ref, sum_ref, ssq_ref, acc_ref):
    k = pl.program_id(2)
    nk = pl.num_programs(2)

    @pl.when(k == 0)
    def _():
        acc_ref[...] = jnp.zeros_like(acc_ref)

    # ReLU fused on the bf16 im2col tile (padding zeros are fixed points of ReLU).
    xr = jnp.maximum(x_ref[...], 0.0)
    acc_ref[...] += jnp.dot(xr, w_ref[...], preferred_element_type=jnp.float32)

    @pl.when(k == nk - 1)
    def _():
        acc = acc_ref[...]
        # bf16 writeback halves the HBM traffic of this intermediate.
        y_ref[...] = acc.astype(y_ref.dtype)
        # Per-M-tile partial statistics, computed while the tile is in VMEM.
        # They are plain outputs (no cross-i accumulation), so the i axis can
        # be megacore-parallel.
        sum_ref[...] = jnp.sum(acc, axis=0).reshape(sum_ref.shape)
        ssq_ref[...] = jnp.sum(acc * acc, axis=0).reshape(ssq_ref.shape)


# --------------------------------------------------------------------------
# Kernel 2: BN apply (elementwise, lane-dense): out = y * scale + shift
# --------------------------------------------------------------------------
def _bn_apply_kernel(y_ref, scale_ref, shift_ref, o_ref):
    y = y_ref[...].astype(jnp.float32)
    o_ref[...] = (y * scale_ref[...] + shift_ref[...]).astype(o_ref.dtype)


# --------------------------------------------------------------------------
# Wrapper: StdConv forward
# --------------------------------------------------------------------------
def std_conv_forward(x, weight, gamma, beta, stride, padding, eps=1e-5):
    """ReLU -> Conv2d(no bias) -> BatchNorm2d (training-mode batch stats)."""
    N, C_in, H, W_in = x.shape
    C_out, _, kh, kw = weight.shape
    Ho = (H + 2 * padding - kh) // stride + 1
    Wo = (W_in + 2 * padding - kw) // stride + 1
    M = N * Ho * Wo
    K = C_in * kh * kw

    # ---- im2col in bf16 via a single XLA patches op (NHWC output, no extra
    # stack/transpose intermediates).  Patch feature order is (c_in, kh, kw),
    # matching weight.reshape(C_out, C_in*kh*kw).
    # TODO(synk): in-kernel patch extraction from the padded NHWC activation
    # would avoid materializing this kh*kw-inflated intermediate entirely.
    x_bf = x.astype(jnp.bfloat16)
    patches = jax.lax.conv_general_dilated_patches(
        x_bf, filter_shape=(kh, kw), window_strides=(stride, stride),
        padding=((padding, padding), (padding, padding)),
        dimension_numbers=("NCHW", "OIHW", "NHWC"))
    X = patches.reshape(M, K)                                    # (M, K) bf16
    Wmat = weight.reshape(C_out, K).T.astype(jnp.bfloat16)       # (K, C_out)

    # ---- TPU-friendly, lane-dense tile sizes ----
    tm = min(512, _round_up(M, 256))
    Np = _round_up(C_out, 128)
    tn = 256 if Np % 256 == 0 else 128        # 256 matches the v6e/v7x 256x256 MXU
    Mp = _round_up(M, tm)
    Kp = _round_up(K, 128)                    # decoupled from tk: no extra K zeros
    tk = _pick_tk(Kp, cap=1024)
    Gm = Mp // tm

    Xp = jnp.pad(X, ((0, Mp - M), (0, Kp - K)))
    Wp = jnp.pad(Wmat, ((0, Kp - K), (0, Np - C_out)))

    grid = (Np // tn, Gm, Kp // tk)

    # Explicit VMEM budget (double-buffered bf16 X/W/y tiles + f32 accumulator);
    # kept far below v7x's 64 MiB physical VMEM.
    vmem_need = (2 * (tm * tk + tk * tn) * 2      # X/W tiles, double-buffered
                 + 2 * tm * tn * 2                # bf16 y tile, double-buffered
                 + tm * tn * 4                    # f32 accumulator scratch
                 + 4 * 2 * tn * 4)                # partial-stat blocks
    vmem_limit = int(min(max(4 * vmem_need, 32 << 20), 48 << 20))

    bytes_accessed = ((Mp * Kp) * (Np // tn) * 2       # X re-streamed per j tile
                      + (Kp * Np) * Gm * 2             # W re-streamed per i tile
                      + Mp * Np * 2                    # bf16 y writeback
                      + 2 * Gm * Np * 4)               # partial stats

    y, psum, pssq = pl.pallas_call(
        _conv_relu_stats_kernel,
        out_shape=(jax.ShapeDtypeStruct((Mp, Np), jnp.bfloat16),
                   jax.ShapeDtypeStruct((Gm, 1, Np), jnp.float32),
                   jax.ShapeDtypeStruct((Gm, 1, Np), jnp.float32)),
        grid_spec=pltpu.PrefetchScalarGridSpec(
            num_scalar_prefetch=0,
            grid=grid,
            in_specs=[pl.BlockSpec((tm, tk), lambda j, i, k: (i, k)),
                      pl.BlockSpec((tk, tn), lambda j, i, k: (k, j))],
            out_specs=[pl.BlockSpec((tm, tn), lambda j, i, k: (i, j)),
                       pl.BlockSpec((1, 1, tn), lambda j, i, k: (i, 0, j)),
                       pl.BlockSpec((1, 1, tn), lambda j, i, k: (i, 0, j))],
            scratch_shapes=[pltpu.VMEM((tm, tn), jnp.float32)]),
        compiler_params=pltpu.CompilerParams(
            dimension_semantics=("parallel", "parallel", "arbitrary"),
            vmem_limit_bytes=vmem_limit),
        cost_estimate=pl.CostEstimate(
            flops=2 * Mp * Kp * Np, transcendentals=0,
            bytes_accessed=int(bytes_accessed)),
    )(Xp, Wp)

    # ---- per-channel BN scale/shift (tiny: C_out scalars; done in the wrapper) ----
    cnt = float(M)                                   # real rows only (padding is zero)
    tot_sum = jnp.sum(psum, axis=(0, 1))             # (Np,)
    tot_ssq = jnp.sum(pssq, axis=(0, 1))
    mean = tot_sum / cnt
    # TODO(synk): E[x^2]-E[x]^2 in f32 can cancel badly if |mean| >> std; a
    # centered second pass / Welford would be needed if BN precision matters.
    var = jnp.maximum(tot_ssq / cnt - mean * mean, 0.0)    # biased var (PyTorch norm)
    inv_std = jax.lax.rsqrt(var + eps)
    gamma_p = jnp.pad(gamma.astype(jnp.float32), (0, Np - C_out))
    beta_p = jnp.pad(beta.astype(jnp.float32), (0, Np - C_out))
    scale = (gamma_p * inv_std).reshape(1, Np)
    shift = (beta_p - mean * gamma_p * inv_std).reshape(1, Np)

    # ---- BN apply kernel: 2-D tiled, MiB-scale lane-dense blocks ----
    tn2 = Np if Np <= 512 else (512 if Np % 512 == 0 else
                                (256 if Np % 256 == 0 else 128))
    tm2 = tm
    for cand in (4096, 2048, 1024):
        if Mp % cand == 0 and cand * tn2 * (2 + 4) <= (12 << 20):
            tm2 = cand
            break

    out = pl.pallas_call(
        _bn_apply_kernel,
        out_shape=jax.ShapeDtypeStruct((Mp, Np), x.dtype),
        grid=(Mp // tm2, Np // tn2),
        in_specs=[pl.BlockSpec((tm2, tn2), lambda i, j: (i, j)),
                  pl.BlockSpec((1, tn2), lambda i, j: (0, j)),
                  pl.BlockSpec((1, tn2), lambda i, j: (0, j))],
        out_specs=pl.BlockSpec((tm2, tn2), lambda i, j: (i, j)),
        compiler_params=pltpu.CompilerParams(
            dimension_semantics=("parallel", "parallel")),
        cost_estimate=pl.CostEstimate(
            flops=2 * Mp * Np, transcendentals=0,
            bytes_accessed=Mp * Np * 2 + Mp * Np * jnp.dtype(x.dtype).itemsize),
    )(y, scale, shift)

    # ---- strip padding, back to NCHW ----
    # TODO(synk): this NCHW transpose is one extra XLA round trip of the output;
    # returning NHWC (or folding the transpose into kernel 2) would remove it,
    # but the PyTorch module's NCHW contract is preserved here.
    out = out[:M, :C_out].reshape(N, Ho, Wo, C_out).transpose(0, 3, 1, 2)
    return out


class StdConvPallas:
    """Mirror of PyTorch StdConv: ReLU - Conv2d(bias=False) - BatchNorm2d."""

    def __init__(self, C_in, C_out, kernel_size, stride, padding,
                 affine=True, key=None, eps=1e-5):
        if key is None:
            key = jax.random.PRNGKey(0)
        bound = 1.0 / math.sqrt(C_in * kernel_size * kernel_size)
        self.weight = jax.random.uniform(
            key, (C_out, C_in, kernel_size, kernel_size),
            minval=-bound, maxval=bound, dtype=jnp.float32)
        # affine=False is equivalent to gamma=1, beta=0.
        self.gamma = jnp.ones((C_out,), jnp.float32)
        self.beta = jnp.zeros((C_out,), jnp.float32)
        self.stride = stride
        self.padding = padding
        self.eps = eps
        # TODO(synk): BatchNorm running_mean/running_var buffer updates (momentum
        # tracking across calls) are not replicated; training-mode batch stats only.

    def __call__(self, x):
        return std_conv_forward(x, self.weight, self.gamma, self.beta,
                                self.stride, self.padding, self.eps)


if __name__ == "__main__":
    key = jax.random.PRNGKey(0)
    k_x, k_w = jax.random.split(key)

    # Small NCHW input consistent with the module usage.
    N, C_in, H, W = 2, 4, 16, 16
    C_out, ksz, stride, pad = 8, 3, 1, 1
    x = jax.random.normal(k_x, (N, C_in, H, W), dtype=jnp.float32)

    mod = StdConvPallas(C_in, C_out, ksz, stride, pad, affine=True, key=k_w)
    y = jax.block_until_ready(mod(x))

    # Pure-JAX f32 reference: ReLU -> conv -> BatchNorm (training-mode batch
    # stats).  The Pallas pipeline uses bf16 operands and a bf16 conv-output
    # intermediate (f32 accumulation/statistics), so compare with a tolerance
    # sized for bf16 rounding.
    xr = jnp.maximum(x, 0.0)
    yc = jax.lax.conv_general_dilated(
        xr, mod.weight, (stride, stride), [(pad, pad), (pad, pad)],
        dimension_numbers=("NCHW", "OIHW", "NCHW"))
    mean = yc.mean(axis=(0, 2, 3), keepdims=True)
    var = yc.var(axis=(0, 2, 3), keepdims=True)          # biased variance
    y_ref = ((yc - mean) / jnp.sqrt(var + mod.eps)
             * mod.gamma[None, :, None, None] + mod.beta[None, :, None, None])

    assert y.shape == y_ref.shape, (y.shape, y_ref.shape)
    max_err = float(jnp.max(jnp.abs(y - y_ref)))
    assert jnp.allclose(y, y_ref, atol=5e-2, rtol=5e-2), f"mismatch: {max_err}"

    print("KERNEL_OK")
</pallas_src>

<mosaic_0001>
module attributes {stable_mosaic.version = 11 : i64} {
  func.func @_conv_relu_stats_kernel(%arg0: i32, %arg1: i32, %arg2: i32, %arg3: memref<512x128xbf16, #tpu.memory_space<vmem>>, %arg4: memref<128x128xbf16, #tpu.memory_space<vmem>>, %arg5: memref<512x128xbf16, #tpu.memory_space<vmem>>, %arg6: memref<1x1x128xf32, #tpu.memory_space<vmem>>, %arg7: memref<1x1x128xf32, #tpu.memory_space<vmem>>, %arg8: memref<512x128xf32, #tpu.memory_space<vmem>>) attributes {dimension_semantics = [#tpu.dimension_semantics<parallel>, #tpu.dimension_semantics<parallel>, #tpu.dimension_semantics<arbitrary>], iteration_bounds = array<i64: 1, 1, 1>, scalar_prefetch = 0 : i64, scratch_operands = 1 : i64, tpu.core_type = #tpu.core_type<tc>, window_params = [{transform_indices = @transform_0, window_bounds = array<i64: 512, 128>}, {transform_indices = @transform_1, window_bounds = array<i64: 128, 128>}, {transform_indices = @transform_2, window_bounds = array<i64: 512, 128>}, {transform_indices = @transform_3, window_bounds = array<i64: 1, 1, 128>}, {transform_indices = @transform_4, window_bounds = array<i64: 1, 1, 128>}]} {
    %c0_i32 = arith.constant 0 : i32
    %0 = arith.cmpi eq, %arg2, %c0_i32 : i32
    %1 = arith.extui %0 : i1 to i32
    %c0_i32_0 = arith.constant 0 : i32
    %2 = arith.cmpi ne, %1, %c0_i32_0 : i32
    scf.if %2 {
      %cst_11 = arith.constant 0.000000e+00 : f32
      %14 = vector.broadcast %cst_11 : f32 to vector<512x128xf32>
      %c0_12 = arith.constant 0 : index
      %c0_13 = arith.constant 0 : index
      %15 = vector.load %arg8[%c0_12, %c0_13] : memref<512x128xf32, #tpu.memory_space<vmem>>, vector<512x128xf32>
      tpu.vector_store %arg8[%c0_12, %c0_13], %14 {strides = array<i32>} : memref<512x128xf32, #tpu.memory_space<vmem>>, vector<512x128xf32>,
    } else {
    }
    %c0 = arith.constant 0 : index
    %c0_1 = arith.constant 0 : index
    %3 = vector.load %arg3[%c0, %c0_1] : memref<512x128xbf16, #tpu.memory_space<vmem>>, vector<512x128xbf16>
    %cst = arith.constant 0.000000e+00 : bf16
    %4 = vector.broadcast %cst : bf16 to vector<512x128xbf16>
    %5 = arith.maximumf %3, %4 : vector<512x128xbf16>
    %c0_2 = arith.constant 0 : index
    %c0_3 = arith.constant 0 : index
    %6 = vector.load %arg8[%c0_2, %c0_3] : memref<512x128xf32, #tpu.memory_space<vmem>>, vector<512x128xf32>
    %c0_4 = arith.constant 0 : index
    %c0_5 = arith.constant 0 : index
    %7 = vector.load %arg4[%c0_4, %c0_5] : memref<128x128xbf16, #tpu.memory_space<vmem>>, vector<128x128xbf16>
    %cst_6 = arith.constant dense<0.000000e+00> : vector<512x128xf32>
    %8 = tpu.matmul %5, %7, %cst_6 {dimension_numbers = #tpu.dot_dimension_numbers<[1], [0], [0], [1], [0, 0, 1, 1], [], []>} : vector<512x128xbf16>, vector<128x128xbf16>, vector<512x128xf32> -> vector<512x128xf32>
    %9 = arith.addf %6, %8 : vector<512x128xf32>
    %c0_7 = arith.constant 0 : index
    %c0_8 = arith.constant 0 : index
    %10 = vector.load %arg8[%c0_7, %c0_8] : memref<512x128xf32, #tpu.memory_space<vmem>>, vector<512x128xf32>
    tpu.vector_store %arg8[%c0_7, %c0_8], %9 {strides = array<i32>} : memref<512x128xf32, #tpu.memory_space<vmem>>, vector<512x128xf32>,
    %c0_i32_9 = arith.constant 0 : i32
    %11 = arith.cmpi eq, %arg2, %c0_i32_9 : i32
    %12 = arith.extui %11 : i1 to i32
    %c0_i32_10 = arith.constant 0 : i32
    %13 = arith.cmpi ne, %12, %c0_i32_10 : i32
    scf.if %13 {
      %c0_11 = arith.constant 0 : index
      %c0_12 = arith.constant 0 : index
      %14 = vector.load %arg8[%c0_11, %c0_12] : memref<512x128xf32, #tpu.memory_space<vmem>>, vector<512x128xf32>
      %15 = arith.truncf %14 : vector<512x128xf32> to vector<512x128xbf16>
      %c0_13 = arith.constant 0 : index
      %c0_14 = arith.constant 0 : index
      %16 = vector.load %arg5[%c0_13, %c0_14] : memref<512x128xbf16, #tpu.memory_space<vmem>>, vector<512x128xbf16>
      tpu.vector_store %arg5[%c0_13, %c0_14], %15 {strides = array<i32>} : memref<512x128xbf16, #tpu.memory_space<vmem>>, vector<512x128xbf16>,
      %cst_15 = arith.constant dense<0.000000e+00> : vector<128xf32>
      %17 = vector.multi_reduction <add>, %14, %cst_15 [0] : vector<512x128xf32> to vector<128xf32>
      %18 = vector.shape_cast %17 : vector<128xf32> to vector<1x1x128xf32>
      %c0_16 = arith.constant 0 : index
      %c0_17 = arith.constant 0 : index
      %c0_18 = arith.constant 0 : index
      %19 = vector.load %arg6[%c0_16, %c0_17, %c0_18] : memref<1x1x128xf32, #tpu.memory_space<vmem>>, vector<1x1x128xf32>
      tpu.vector_store %arg6[%c0_16, %c0_17, %c0_18], %18 {strides = array<i32>} : memref<1x1x128xf32, #tpu.memory_space<vmem>>, vector<1x1x128xf32>,
      %20 = arith.mulf %14, %14 : vector<512x128xf32>
      %cst_19 = arith.constant dense<0.000000e+00> : vector<128xf32>
      %21 = vector.multi_reduction <add>, %20, %cst_19 [0] : vector<512x128xf32> to vector<128xf32>
      %22 = vector.shape_cast %21 : vector<128xf32> to vector<1x1x128xf32>
      %c0_20 = arith.constant 0 : index
      %c0_21 = arith.constant 0 : index
      %c0_22 = arith.constant 0 : index
      %23 = vector.load %arg7[%c0_20, %c0_21, %c0_22] : memref<1x1x128xf32, #tpu.memory_space<vmem>>, vector<1x1x128xf32>
      tpu.vector_store %arg7[%c0_20, %c0_21, %c0_22], %22 {strides = array<i32>} : memref<1x1x128xf32, #tpu.memory_space<vmem>>, vector<1x1x128xf32>,
    } else {
    }
    return
  }
  func.func @transform_0(%arg0: i32, %arg1: i32, %arg2: i32) -> (i32, i32) {
    %c0_i32 = arith.constant 0 : i32
    return %arg1, %arg2 : i32, i32
  }
  func.func @transform_1(%arg0: i32, %arg1: i32, %arg2: i32) -> (i32, i32) {
    %c0_i32 = arith.constant 0 : i32
    return %arg2, %arg0 : i32, i32
  }
  func.func @transform_2(%arg0: i32, %arg1: i32, %arg2: i32) -> (i32, i32) {
    %c0_i32 = arith.constant 0 : i32
    return %arg1, %arg0 : i32, i32
  }
  func.func @transform_3(%arg0: i32, %arg1: i32, %arg2: i32) -> (i32, i32, i32) {
    %c0_i32 = arith.constant 0 : i32
    %c0_i32_0 = arith.constant 0 : i32
    return %arg1, %c0_i32, %arg0 : i32, i32, i32
  }
  func.func @transform_4(%arg0: i32, %arg1: i32, %arg2: i32) -> (i32, i32, i32) {
    %c0_i32 = arith.constant 0 : i32
    %c0_i32_0 = arith.constant 0 : i32
    return %arg1, %c0_i32, %arg0 : i32, i32, i32
  }
}

</mosaic_0001>

<llo_original>
// kernel: tpu_custom_call.1
$region0: #{tpu_custom_call.1}
  #allocation0 [shape = 'u32[]', space=smem, size = 0x4, offset = 0x4, fixed_abs, tag = 'smem constant byte address 0x4 - core index']
  #allocation1 [shape = 'u32[144,128]{1,0:T(1,128)}', space=vmem, size = 0x12000, scoped, tag = 'internal scratch']
  #allocation2 [shape = 'f32[512,128]{1,0:T(8,128)}', space=vmem, size = 0x40000, scoped, tag = 'scratch operand']
  %s0 = inlined_call_operand.hbm [shape: bf16[512,128], index: 0, kind: input, shape index: {}]
  %s1 = inlined_call_operand.hbm [shape: bf16[128,128], index: 1, kind: input, shape index: {}]
  %s2 = inlined_call_operand.hbm [shape: bf16[512,128], index: 2, kind: output, shape index: {0}]
  %s3 = inlined_call_operand.hbm [shape: f32[1,1,128], index: 3, kind: output, shape index: {1}]
  %s4 = inlined_call_operand.hbm [shape: f32[1,1,128], index: 4, kind: output, shape index: {2}]
  %5 = xla_tuple %s2, %s3, %s4
  %s6 = sld [smem:[#allocation0]]
  $region50: #{tpu_custom_call.1} parent=0
    _
  %s8 = ssub.s32 1, %s6
  %s9 = scalar_select 0, %s8, %s6
  $region1: #{tpu_custom_call.1} parent=0
    #allocation3 [shape = 'u8[131072]{0}', space=vmem, size = 0x20000, scoped, tag = 'input window, operand 0, single buffered']
    #allocation4 [shape = 's32[1]{0}', space=sflag, size = 0x4, scoped, tag = 'scoped memory for tpu_custom_call.1']
    #allocation5 [shape = 's32[1]{0}', space=sflag, size = 0x4, scoped, tag = 'scoped memory for tpu_custom_call.1']
    #allocation6 [shape = 'u8[32768]{0}', space=vmem, size = 0x8000, scoped, tag = 'input window, operand 1, single buffered']
    #allocation7 [shape = 's32[1]{0}', space=sflag, size = 0x4, scoped, tag = 'scoped memory for tpu_custom_call.1']
    #allocation8 [shape = 'u8[131072]{0}', space=vmem, size = 0x20000, scoped, tag = 'output window, operand 0, single buffered']
    #allocation9 [shape = 'u8[512]{0}', space=vmem, size = 0x400, scoped, tag = 'output window, operand 1, single buffered']
    #allocation10 [shape = 's32[1]{0}', space=sflag, size = 0x4, scoped, tag = 'scoped memory for tpu_custom_call.1']
    #allocation11 [shape = 'u8[512]{0}', space=vmem, size = 0x400, scoped, tag = 'output window, operand 2, single buffered']
    %10 = vsyncpa [#allocation4], 0
    %11 = vsyncpa [#allocation7], 0
    %12 = vsyncpa [#allocation5], 0
    %13 = vsyncpa [#allocation10], 0
    // Predicated region
    $region2: #{tpu_custom_call.1} parent=1 // pred_check
      _
    $region3: #{tpu_custom_call.1} parent=1 // pred_check_branch
      %15 = sbr.rel (0) target = $region5
    $region4: #{tpu_custom_call.1} parent=1 // pred_region
      %s17 = ssub.s32 4096, 4096
      %18 = vsyncadd [#allocation4], %s17
      %s19 = sshll.u32 [#allocation3], 4
      %s20 = int_to_ptr.vmem [resolvable:$true] %s19
      %25 = dma.hbm_to_vmem [thread:$0]  %s0, 4096, %s20, [#allocation4], 64, 64, 4
    $region5: #{tpu_custom_call.1} parent=1 // pred_fallthru
      _
    // Predicated region
    $region6: #{tpu_custom_call.1} parent=1 // pred_check
      _
    $region7: #{tpu_custom_call.1} parent=1 // pred_check_branch
      %27 = sbr.rel (0) target = $region9
    $region8: #{tpu_custom_call.1} parent=1 // pred_region
      %s29 = ssub.s32 1024, 1024
      %30 = vsyncadd [#allocation7], %s29
      %s31 = sshll.u32 [#allocation6], 4
      %s32 = int_to_ptr.vmem [resolvable:$true] %s31
      %37 = dma.hbm_to_vmem [thread:$0]  %s1, 1024, %s32, [#allocation7], 64, 64, 4
    $region9: #{tpu_custom_call.1} parent=1 // pred_fallthru
      _
    // Predicated region
    $region10: #{tpu_custom_call.1} parent=1 // pred_check
      _
    $region11: #{tpu_custom_call.1} parent=1 // pred_check_branch
      %39 = sbr.rel (0) target = $region13
    $region12: #{tpu_custom_call.1} parent=1 // pred_region
      %40 = dma.done [#allocation4], 4096
    $region13: #{tpu_custom_call.1} parent=1 // pred_fallthru
      _
    // Predicated region
    $region14: #{tpu_custom_call.1} parent=1 // pred_check
      _
    $region15: #{tpu_custom_call.1} parent=1 // pred_check_branch
      %42 = sbr.rel (0) target = $region17
    $region16: #{tpu_custom_call.1} parent=1 // pred_region
      %43 = dma.done [#allocation7], 1024
    $region17: #{tpu_custom_call.1} parent=1 // pred_fallthru
      _
    %p45 = scmp.eq.s32.totalorder 0, 0
    // Predicated region
    $region18: #{tpu_custom_call.1} parent=1 // pred_check
      %p46 = pneg %p45
    $region19: #{tpu_custom_call.1} parent=1 // pred_check_branch
      %48 = sbr.rel (%p46) target = $region21
    $region20: #{tpu_custom_call.1} parent=1 // pred_region
      %49 = vst [vmem:[#allocation2] sm:$0xff] 0.0
      %50 = vst [vmem:[#allocation2 + $0x8] sm:$0xff] 0.0
      %51 = vst [vmem:[#allocation2 + $0x10] sm:$0xff] 0.0
      %52 = vst [vmem:[#allocation2 + $0x18] sm:$0xff] 0.0
      %53 = vst [vmem:[#allocation2 + $0x20] sm:$0xff] 0.0
      %54 = vst [vmem:[#allocation2 + $0x28] sm:$0xff] 0.0
      %55 = vst [vmem:[#allocation2 + $0x30] sm:$0xff] 0.0
      %56 = vst [vmem:[#allocation2 + $0x38] sm:$0xff] 0.0
      %57 = vst [vmem:[#allocation2 + $0x40] sm:$0xff] 0.0
      %58 = vst [vmem:[#allocation2 + $0x48] sm:$0xff] 0.0
      %59 = vst [vmem:[#allocation2 + $0x50] sm:$0xff] 0.0
      %60 = vst [vmem:[#allocation2 + $0x58] sm:$0xff] 0.0
      %61 = vst [vmem:[#allocation2 + $0x60] sm:$0xff] 0.0
      %62 = vst [vmem:[#allocation2 + $0x68] sm:$0xff] 0.0
      %63 = vst [vmem:[#allocation2 + $0x70] sm:$0xff] 0.0
      %64 = vst [vmem:[#allocation2 + $0x78] sm:$0xff] 0.0
      %65 = vst [vmem:[#allocation2 + $0x80] sm:$0xff] 0.0
      %66 = vst [vmem:[#allocation2 + $0x88] sm:$0xff] 0.0
      %67 = vst [vmem:[#allocation2 + $0x90] sm:$0xff] 0.0
      %68 = vst [vmem:[#allocation2 + $0x98] sm:$0xff] 0.0
      %69 = vst [vmem:[#allocation2 + $0xa0] sm:$0xff] 0.0
      %70 = vst [vmem:[#allocation2 + $0xa8] sm:$0xff] 0.0
      %71 = vst [vmem:[#allocation2 + $0xb0] sm:$0xff] 0.0
      %72 = vst [vmem:[#allocation2 + $0xb8] sm:$0xff] 0.0
      %73 = vst [vmem:[#allocation2 + $0xc0] sm:$0xff] 0.0
      %74 = vst [vmem:[#allocation2 + $0xc8] sm:$0xff] 0.0
      %75 = vst [vmem:[#allocation2 + $0xd0] sm:$0xff] 0.0
      %76 = vst [vmem:[#allocation2 + $0xd8] sm:$0xff] 0.0
      %77 = vst [vmem:[#allocation2 + $0xe0] sm:$0xff] 0.0
      %78 = vst [vmem:[#allocation2 + $0xe8] sm:$0xff] 0.0
      %79 = vst [vmem:[#allocation2 + $0xf0] sm:$0xff] 0.0
      %80 = vst [vmem:[#allocation2 + $0xf8] sm:$0xff] 0.0
      %81 = vst [vmem:[#allocation2 + $0x100] sm:$0xff] 0.0
      %82 = vst [vmem:[#allocation2 + $0x108] sm:$0xff] 0.0
      %83 = vst [vmem:[#allocation2 + $0x110] sm:$0xff] 0.0
      %84 = vst [vmem:[#allocation2 + $0x118] sm:$0xff] 0.0
      %85 = vst [vmem:[#allocation2 + $0x120] sm:$0xff] 0.0
      %86 = vst [vmem:[#allocation2 + $0x128] sm:$0xff] 0.0
      %87 = vst [vmem:[#allocation2 + $0x130] sm:$0xff] 0.0
      %88 = vst [vmem:[#allocation2 + $0x138] sm:$0xff] 0.0
      %89 = vst [vmem:[#allocation2 + $0x140] sm:$0xff] 0.0
      %90 = vst [vmem:[#allocation2 + $0x148] sm:$0xff] 0.0
      %91 = vst [vmem:[#allocation2 + $0x150] sm:$0xff] 0.0
      %92 = vst [vmem:[#allocation2 + $0x158] sm:$0xff] 0.0
      %93 = vst [vmem:[#allocation2 + $0x160] sm:$0xff] 0.0
      %94 = vst [vmem:[#allocation2 + $0x168] sm:$0xff] 0.0
      %95 = vst [vmem:[#allocation2 + $0x170] sm:$0xff] 0.0
      %96 = vst [vmem:[#allocation2 + $0x178] sm:$0xff] 0.0
      %97 = vst [vmem:[#allocation2 + $0x180] sm:$0xff] 0.0
      %98 = vst [vmem:[#allocation2 + $0x188] sm:$0xff] 0.0
      %99 = vst [vmem:[#allocation2 + $0x190] sm:$0xff] 0.0
      %100 = vst [vmem:[#allocation2 + $0x198] sm:$0xff] 0.0
      %101 = vst [vmem:[#allocation2 + $0x1a0] sm:$0xff] 0.0
      %102 = vst [vmem:[#allocation2 + $0x1a8] sm:$0xff] 0.0
      %103 = vst [vmem:[#allocation2 + $0x1b0] sm:$0xff] 0.0
      %104 = vst [vmem:[#allocation2 + $0x1b8] sm:$0xff] 0.0
      %105 = vst [vmem:[#allocation2 + $0x1c0] sm:$0xff] 0.0
      %106 = vst [vmem:[#allocation2 + $0x1c8] sm:$0xff] 0.0
      %107 = vst [vmem:[#allocation2 + $0x1d0] sm:$0xff] 0.0
      %108 = vst [vmem:[#allocation2 + $0x1d8] sm:$0xff] 0.0
      %109 = vst [vmem:[#allocation2 + $0x1e0] sm:$0xff] 0.0
      %110 = vst [vmem:[#allocation2 + $0x1e8] sm:$0xff] 0.0
      %111 = vst [vmem:[#allocation2 + $0x1f0] sm:$0xff] 0.0
      %112 = vst [vmem:[#allocation2 + $0x1f8] sm:$0xff] 0.0
    $region21: #{tpu_custom_call.1} parent=1 // pred_fallthru
      _
    %v113 = vld [vmem:[#allocation3] sm:$0xf]
    %v114 = vld [vmem:[#allocation3 + $0x4] sm:$0xf]
    %v115 = vld [vmem:[#allocation3 + $0x8] sm:$0xf]
    %v116 = vld [vmem:[#allocation3 + $0xc] sm:$0xf]
    %v117 = vld [vmem:[#allocation3 + $0x10] sm:$0xf]
    %v118 = vld [vmem:[#allocation3 + $0x14] sm:$0xf]
    %v119 = vld [vmem:[#allocation3 + $0x18] sm:$0xf]
    %v120 = vld [vmem:[#allocation3 + $0x1c] sm:$0xf]
    %v121 = vld [vmem:[#allocation3 + $0x20] sm:$0xf]
    %v122 = vld [vmem:[#allocation3 + $0x24] sm:$0xf]
    %v123 = vld [vmem:[#allocation3 + $0x28] sm:$0xf]
    %v124 = vld [vmem:[#allocation3 + $0x2c] sm:$0xf]
    %v125 = vld [vmem:[#allocation3 + $0x30] sm:$0xf]
    %v126 = vld [vmem:[#allocation3 + $0x34] sm:$0xf]
    %v127 = vld [vmem:[#allocation3 + $0x38] sm:$0xf]
    %v128 = vld [vmem:[#allocation3 + $0x3c] sm:$0xf]
    %v129 = vld [vmem:[#allocation3 + $0x40] sm:$0xf]
    %v130 = vld [vmem:[#allocation3 + $0x44] sm:$0xf]
    %v131 = vld [vmem:[#allocation3 + $0x48] sm:$0xf]
    %v132 = vld [vmem:[#allocation3 + $0x4c] sm:$0xf]
    %v133 = vld [vmem:[#allocation3 + $0x50] sm:$0xf]
    %v134 = vld [vmem:[#allocation3 + $0x54] sm:$0xf]
    %v135 = vld [vmem:[#allocation3 + $0x58] sm:$0xf]
    %v136 = vld [vmem:[#allocation3 + $0x5c] sm:$0xf]
    %v137 = vld [vmem:[#allocation3 + $0x60] sm:$0xf]
    %v138 = vld [vmem:[#allocation3 + $0x64] sm:$0xf]
    %v139 = vld [vmem:[#allocation3 + $0x68] sm:$0xf]
    %v140 = vld [vmem:[#allocation3 + $0x6c] sm:$0xf]
    %v141 = vld [vmem:[#allocation3 + $0x70] sm:$0xf]
    %v142 = vld [vmem:[#allocation3 + $0x74] sm:$0xf]
    %v143 = vld [vmem:[#allocation3 + $0x78] sm:$0xf]
    %v144 = vld [vmem:[#allocation3 + $0x7c] sm:$0xf]
    %v145 = vld [vmem:[#allocation3 + $0x80] sm:$0xf]
    %v146 = vld [vmem:[#allocation3 + $0x84] sm:$0xf]
    %v147 = vld [vmem:[#allocation3 + $0x88] sm:$0xf]
    %v148 = vld [vmem:[#allocation3 + $0x8c] sm:$0xf]
    %v149 = vld [vmem:[#allocation3 + $0x90] sm:$0xf]
    %v150 = vld [vmem:[#allocation3 + $0x94] sm:$0xf]
    %v151 = vld [vmem:[#allocation3 + $0x98] sm:$0xf]
    %v152 = vld [vmem:[#allocation3 + $0x9c] sm:$0xf]
    %v153 = vld [vmem:[#allocation3 + $0xa0] sm:$0xf]
    %v154 = vld [vmem:[#allocation3 + $0xa4] sm:$0xf]
    %v155 = vld [vmem:[#allocation3 + $0xa8] sm:$0xf]
    %v156 = vld [vmem:[#allocation3 + $0xac] sm:$0xf]
    %v157 = vld [vmem:[#allocation3 + $0xb0] sm:$0xf]
    %v158 = vld [vmem:[#allocation3 + $0xb4] sm:$0xf]
    %v159 = vld [vmem:[#allocation3 + $0xb8] sm:$0xf]
    %v160 = vld [vmem:[#allocation3 + $0xbc] sm:$0xf]
    %v161 = vld [vmem:[#allocation3 + $0xc0] sm:$0xf]
    %v162 = vld [vmem:[#allocation3 + $0xc4] sm:$0xf]
    %v163 = vld [vmem:[#allocation3 + $0xc8] sm:$0xf]
    %v164 = vld [vmem:[#allocation3 + $0xcc] sm:$0xf]
    %v165 = vld [vmem:[#allocation3 + $0xd0] sm:$0xf]
    %v166 = vld [vmem:[#allocation3 + $0xd4] sm:$0xf]
    %v167 = vld [vmem:[#allocation3 + $0xd8] sm:$0xf]
    %v168 = vld [vmem:[#allocation3 + $0xdc] sm:$0xf]
    %v169 = vld [vmem:[#allocation3 + $0xe0] sm:$0xf]
    %v170 = vld [vmem:[#allocation3 + $0xe4] sm:$0xf]
    %v171 = vld [vmem:[#allocation3 + $0xe8] sm:$0xf]
    %v172 = vld [vmem:[#allocation3 + $0xec] sm:$0xf]
    %v173 = vld [vmem:[#allocation3 + $0xf0] sm:$0xf]
    %v174 = vld [vmem:[#allocation3 + $0xf4] sm:$0xf]
    %v175 = vld [vmem:[#allocation3 + $0xf8] sm:$0xf]
    %v176 = vld [vmem:[#allocation3 + $0xfc] sm:$0xf]
    %v177 = vmax.bf16 %v113, 0
    %v178 = vmax.bf16 %v114, 0
    %v179 = vmax.bf16 %v115, 0
    %v180 = vmax.bf16 %v116, 0
    %v181 = vmax.bf16 %v117, 0
    %v182 = vmax.bf16 %v118, 0
    %v183 = vmax.bf16 %v119, 0
    %v184 = vmax.bf16 %v120, 0
    %v185 = vmax.bf16 %v121, 0
    %v186 = vmax.bf16 %v122, 0
    %v187 = vmax.bf16 %v123, 0
    %v188 = vmax.bf16 %v124, 0
    %v189 = vmax.bf16 %v125, 0
    %v190 = vmax.bf16 %v126, 0
    %v191 = vmax.bf16 %v127, 0
    %v192 = vmax.bf16 %v128, 0
    %v193 = vmax.bf16 %v129, 0
    %v194 = vmax.bf16 %v130, 0
    %v195 = vmax.bf16 %v131, 0
    %v196 = vmax.bf16 %v132, 0
    %v197 = vmax.bf16 %v133, 0
    %v198 = vmax.bf16 %v134, 0
    %v199 = vmax.bf16 %v135, 0
    %v200 = vmax.bf16 %v136, 0
    %v201 = vmax.bf16 %v137, 0
    %v202 = vmax.bf16 %v138, 0
    %v203 = vmax.bf16 %v139, 0
    %v204 = vmax.bf16 %v140, 0
    %v205 = vmax.bf16 %v141, 0
    %v206 = vmax.bf16 %v142, 0
    %v207 = vmax.bf16 %v143, 0
    %v208 = vmax.bf16 %v144, 0
    %v209 = vmax.bf16 %v145, 0
    %v210 = vmax.bf16 %v146, 0
    %v211 = vmax.bf16 %v147, 0
    %v212 = vmax.bf16 %v148, 0
    %v213 = vmax.bf16 %v149, 0
    %v214 = vmax.bf16 %v150, 0
    %v215 = vmax.bf16 %v151, 0
    %v216 = vmax.bf16 %v152, 0
    %v217 = vmax.bf16 %v153, 0
    %v218 = vmax.bf16 %v154, 0
    %v219 = vmax.bf16 %v155, 0
    %v220 = vmax.bf16 %v156, 0
    %v221 = vmax.bf16 %v157, 0
    %v222 = vmax.bf16 %v158, 0
    %v223 = vmax.bf16 %v159, 0
    %v224 = vmax.bf16 %v160, 0
    %v225 = vmax.bf16 %v161, 0
    %v226 = vmax.bf16 %v162, 0
    %v227 = vmax.bf16 %v163, 0
    %v228 = vmax.bf16 %v164, 0
    %v229 = vmax.bf16 %v165, 0
    %v230 = vmax.bf16 %v166, 0
    %v231 = vmax.bf16 %v167, 0
    %v232 = vmax.bf16 %v168, 0
    %v233 = vmax.bf16 %v169, 0
    %v234 = vmax.bf16 %v170, 0
    %v235 = vmax.bf16 %v171, 0
    %v236 = vmax.bf16 %v172, 0
    %v237 = vmax.bf16 %v173, 0
    %v238 = vmax.bf16 %v174, 0
    %v239 = vmax.bf16 %v175, 0
    %v240 = vmax.bf16 %v176, 0
    %v241 = vld [vmem:[#allocation2] sm:$0xff]
    %v242 = vld [vmem:[#allocation2 + $0x8] sm:$0xff]
    %v243 = vld [vmem:[#allocation2 + $0x10] sm:$0xff]
    %v244 = vld [vmem:[#allocation2 + $0x18] sm:$0xff]
    %v245 = vld [vmem:[#allocation2 + $0x20] sm:$0xff]
    %v246 = vld [vmem:[#allocation2 + $0x28] sm:$0xff]
    %v247 = vld [vmem:[#allocation2 + $0x30] sm:$0xff]
    %v248 = vld [vmem:[#allocation2 + $0x38] sm:$0xff]
    %v249 = vld [vmem:[#allocation2 + $0x40] sm:$0xff]
    %v250 = vld [vmem:[#allocation2 + $0x48] sm:$0xff]
    %v251 = vld [vmem:[#allocation2 + $0x50] sm:$0xff]
    %v252 = vld [vmem:[#allocation2 + $0x58] sm:$0xff]
    %v253 = vld [vmem:[#allocation2 + $0x60] sm:$0xff]
    %v254 = vld [vmem:[#allocation2 + $0x68] sm:$0xff]
    %v255 = vld [vmem:[#allocation2 + $0x70] sm:$0xff]
    %v256 = vld [vmem:[#allocation2 + $0x78] sm:$0xff]
    %v257 = vld [vmem:[#allocation2 + $0x80] sm:$0xff]
    %v258 = vld [vmem:[#allocation2 + $0x88] sm:$0xff]
    %v259 = vld [vmem:[#allocation2 + $0x90] sm:$0xff]
    %v260 = vld [vmem:[#allocation2 + $0x98] sm:$0xff]
    %v261 = vld [vmem:[#allocation2 + $0xa0] sm:$0xff]
    %v262 = vld [vmem:[#allocation2 + $0xa8] sm:$0xff]
    %v263 = vld [vmem:[#allocation2 + $0xb0] sm:$0xff]
    %v264 = vld [vmem:[#allocation2 + $0xb8] sm:$0xff]
    %v265 = vld [vmem:[#allocation2 + $0xc0] sm:$0xff]
    %v266 = vld [vmem:[#allocation2 + $0xc8] sm:$0xff]
    %v267 = vld [vmem:[#allocation2 + $0xd0] sm:$0xff]
    %v268 = vld [vmem:[#allocation2 + $0xd8] sm:$0xff]
    %v269 = vld [vmem:[#allocation2 + $0xe0] sm:$0xff]
    %v270 = vld [vmem:[#allocation2 + $0xe8] sm:$0xff]
    %v271 = vld [vmem:[#allocation2 + $0xf0] sm:$0xff]
    %v272 = vld [vmem:[#allocation2 + $0xf8] sm:$0xff]
    %v273 = vld [vmem:[#allocation2 + $0x100] sm:$0xff]
    %v274 = vld [vmem:[#allocation2 + $0x108] sm:$0xff]
    %v275 = vld [vmem:[#allocation2 + $0x110] sm:$0xff]
    %v276 = vld [vmem:[#allocation2 + $0x118] sm:$0xff]
    %v277 = vld [vmem:[#allocation2 + $0x120] sm:$0xff]
    %v278 = vld [vmem:[#allocation2 + $0x128] sm:$0xff]
    %v279 = vld [vmem:[#allocation2 + $0x130] sm:$0xff]
    %v280 = vld [vmem:[#allocation2 + $0x138] sm:$0xff]
    %v281 = vld [vmem:[#allocation2 + $0x140] sm:$0xff]
    %v282 = vld [vmem:[#allocation2 + $0x148] sm:$0xff]
    %v283 = vld [vmem:[#allocation2 + $0x150] sm:$0xff]
    %v284 = vld [vmem:[#allocation2 + $0x158] sm:$0xff]
    %v285 = vld [vmem:[#allocation2 + $0x160] sm:$0xff]
    %v286 = vld [vmem:[#allocation2 + $0x168] sm:$0xff]
    %v287 = vld [vmem:[#allocation2 + $0x170] sm:$0xff]
    %v288 = vld [vmem:[#allocation2 + $0x178] sm:$0xff]
    %v289 = vld [vmem:[#allocation2 + $0x180] sm:$0xff]
    %v290 = vld [vmem:[#allocation2 + $0x188] sm:$0xff]
    %v291 = vld [vmem:[#allocation2 + $0x190] sm:$0xff]
    %v292 = vld [vmem:[#allocation2 + $0x198] sm:$0xff]
    %v293 = vld [vmem:[#allocation2 + $0x1a0] sm:$0xff]
    %v294 = vld [vmem:[#allocation2 + $0x1a8] sm:$0xff]
    %v295 = vld [vmem:[#allocation2 + $0x1b0] sm:$0xff]
    %v296 = vld [vmem:[#allocation2 + $0x1b8] sm:$0xff]
    %v297 = vld [vmem:[#allocation2 + $0x1c0] sm:$0xff]
    %v298 = vld [vmem:[#allocation2 + $0x1c8] sm:$0xff]
    %v299 = vld [vmem:[#allocation2 + $0x1d0] sm:$0xff]
    %v300 = vld [vmem:[#allocation2 + $0x1d8] sm:$0xff]
    %v301 = vld [vmem:[#allocation2 + $0x1e0] sm:$0xff]
    %v302 = vld [vmem:[#allocation2 + $0x1e8] sm:$0xff]
    %v303 = vld [vmem:[#allocation2 + $0x1f0] sm:$0xff]
    %v304 = vld [vmem:[#allocation2 + $0x1f8] sm:$0xff]
    %v305 = vld [vmem:[#allocation6] sm:$0xf]
    %v306 = vld [vmem:[#allocation6 + $0x4] sm:$0xf]
    %v307 = vld [vmem:[#allocation6 + $0x8] sm:$0xf]
    %v308 = vld [vmem:[#allocation6 + $0xc] sm:$0xf]
    %v309 = vld [vmem:[#allocation6 + $0x10] sm:$0xf]
    %v310 = vld [vmem:[#allocation6 + $0x14] sm:$0xf]
    %v311 = vld [vmem:[#allocation6 + $0x18] sm:$0xf]
    %v312 = vld [vmem:[#allocation6 + $0x1c] sm:$0xf]
    %v313 = vld [vmem:[#allocation6 + $0x20] sm:$0xf]
    %v314 = vld [vmem:[#allocation6 + $0x24] sm:$0xf]
    %v315 = vld [vmem:[#allocation6 + $0x28] sm:$0xf]
    %v316 = vld [vmem:[#allocation6 + $0x2c] sm:$0xf]
    %v317 = vld [vmem:[#allocation6 + $0x30] sm:$0xf]
    %v318 = vld [vmem:[#allocation6 + $0x34] sm:$0xf]
    %v319 = vld [vmem:[#allocation6 + $0x38] sm:$0xf]
    %v320 = vld [vmem:[#allocation6 + $0x3c] sm:$0xf]
    %v385 = vunpack.c.l.b16 %v177
    %v386 = vunpack.c.l.b16 %v178
    %v387 = vunpack.c.l.b16 %v179
    %v388 = vunpack.c.l.b16 %v180
    %v389 = vunpack.c.l.b16 %v181
    %v390 = vunpack.c.l.b16 %v182
    %v391 = vunpack.c.l.b16 %v183
    %v392 = vunpack.c.l.b16 %v184
    %v393 = vunpack.c.l.b16 %v185
    %v394 = vunpack.c.l.b16 %v186
    %v395 = vunpack.c.l.b16 %v187
    %v396 = vunpack.c.l.b16 %v188
    %v397 = vunpack.c.l.b16 %v189
    %v398 = vunpack.c.l.b16 %v190
    %v399 = vunpack.c.l.b16 %v191
    %v400 = vunpack.c.l.b16 %v192
    %v401 = vunpack.c.l.b16 %v193
    %v402 = vunpack.c.l.b16 %v194
    %v403 = vunpack.c.l.b16 %v195
    %v404 = vunpack.c.l.b16 %v196
    %v405 = vunpack.c.l.b16 %v197
    %v406 = vunpack.c.l.b16 %v198
    %v407 = vunpack.c.l.b16 %v199
    %v408 = vunpack.c.l.b16 %v200
    %v409 = vunpack.c.l.b16 %v201
    %v410 = vunpack.c.l.b16 %v202
    %v411 = vunpack.c.l.b16 %v203
    %v412 = vunpack.c.l.b16 %v204
    %v413 = vunpack.c.l.b16 %v205
    %v414 = vunpack.c.l.b16 %v206
    %v415 = vunpack.c.l.b16 %v207
    %v416 = vunpack.c.l.b16 %v208
    %v417 = vunpack.c.l.b16 %v209
    %v418 = vunpack.c.l.b16 %v210
    %v419 = vunpack.c.l.b16 %v211
    %v420 = vunpack.c.l.b16 %v212
    %v421 = vunpack.c.l.b16 %v213
    %v422 = vunpack.c.l.b16 %v214
    %v423 = vunpack.c.l.b16 %v215
    %v424 = vunpack.c.l.b16 %v216
    %v425 = vunpack.c.l.b16 %v217
    %v426 = vunpack.c.l.b16 %v218
    %v427 = vunpack.c.l.b16 %v219
    %v428 = vunpack.c.l.b16 %v220
    %v429 = vunpack.c.l.b16 %v221
    %v430 = vunpack.c.l.b16 %v222
    %v431 = vunpack.c.l.b16 %v223
    %v432 = vunpack.c.l.b16 %v224
    %v433 = vunpack.c.l.b16 %v225
    %v434 = vunpack.c.l.b16 %v226
    %v435 = vunpack.c.l.b16 %v227
    %v436 = vunpack.c.l.b16 %v228
    %v437 = vunpack.c.l.b16 %v229
    %v438 = vunpack.c.l.b16 %v230
    %v439 = vunpack.c.l.b16 %v231
    %v440 = vunpack.c.l.b16 %v232
    %v441 = vunpack.c.l.b16 %v233
    %v442 = vunpack.c.l.b16 %v234
    %v443 = vunpack.c.l.b16 %v235
    %v444 = vunpack.c.l.b16 %v236
    %v445 = vunpack.c.l.b16 %v237
    %v446 = vunpack.c.l.b16 %v238
    %v447 = vunpack.c.l.b16 %v239
    %v448 = vunpack.c.l.b16 %v240
    %v449 = vpack.c.b16 %v386, %v385
    %v450 = vpack.c.b16 %v388, %v387
    %v451 = vpack.c.b16 %v390, %v389
    %v452 = vpack.c.b16 %v392, %v391
    %v453 = vpack.c.b16 %v394, %v393
    %v454 = vpack.c.b16 %v396, %v395
    %v455 = vpack.c.b16 %v398, %v397
    %v456 = vpack.c.b16 %v400, %v399
    %v457 = vpack.c.b16 %v402, %v401
    %v458 = vpack.c.b16 %v404, %v403
    %v459 = vpack.c.b16 %v406, %v405
    %v460 = vpack.c.b16 %v408, %v407
    %v461 = vpack.c.b16 %v410, %v409
    %v462 = vpack.c.b16 %v412, %v411
    %v463 = vpack.c.b16 %v414, %v413
    %v464 = vpack.c.b16 %v416, %v415
    %v465 = vpack.c.b16 %v418, %v417
    %v466 = vpack.c.b16 %v420, %v419
    %v467 = vpack.c.b16 %v422, %v421
    %v468 = vpack.c.b16 %v424, %v423
    %v469 = vpack.c.b16 %v426, %v425
    %v470 = vpack.c.b16 %v428, %v427
    %v471 = vpack.c.b16 %v430, %v429
    %v472 = vpack.c.b16 %v432, %v431
    %v473 = vpack.c.b16 %v434, %v433
    %v474 = vpack.c.b16 %v436, %v435
    %v475 = vpack.c.b16 %v438, %v437
    %v476 = vpack.c.b16 %v440, %v439
    %v477 = vpack.c.b16 %v442, %v441
    %v478 = vpack.c.b16 %v444, %v443
    %v479 = vpack.c.b16 %v446, %v445
    %v480 = vpack.c.b16 %v448, %v447
    %v529 = vunpack.c.l.b16 %v305
    %v530 = vunpack.c.l.b16 %v306
    %v531 = vunpack.c.l.b16 %v307
    %v532 = vunpack.c.l.b16 %v308
    %v533 = vunpack.c.l.b16 %v309
    %v534 = vunpack.c.l.b16 %v310
    %v535 = vunpack.c.l.b16 %v311
    %v536 = vunpack.c.l.b16 %v312
    %v537 = vunpack.c.l.b16 %v313
    %v538 = vunpack.c.l.b16 %v314
    %v539 = vunpack.c.l.b16 %v315
    %v540 = vunpack.c.l.b16 %v316
    %v541 = vunpack.c.l.b16 %v317
    %v542 = vunpack.c.l.b16 %v318
    %v543 = vunpack.c.l.b16 %v319
    %v544 = vunpack.c.l.b16 %v320
    %v545 = vpack.c.b16 %v530, %v529
    %v546 = vpack.c.b16 %v532, %v531
    %v547 = vpack.c.b16 %v534, %v533
    %v548 = vpack.c.b16 %v536, %v535
    %v549 = vpack.c.b16 %v538, %v537
    %v550 = vpack.c.b16 %v540, %v539
    %v551 = vpack.c.b16 %v542, %v541
    %v552 = vpack.c.b16 %v544, %v543
    %561 = vmatprep.subr.bf16.mxu0 0
    %562 = vmatpush1.bf16.msra.mxu0 %v545
    %563 = vmatprep.subr.bf16.mxu0 0
    %564 = vmatpush1.bf16.msra.mxu0 %v546
    %565 = vmatprep.subr.bf16.mxu0 0
    %566 = vmatpush1.bf16.msra.mxu0 %v547
    %567 = vmatprep.subr.bf16.mxu0 0
    %568 = vmatpush1.bf16.msra.mxu0 %v548
    %569 = vmatprep.subr.bf16.mxu0 0
    %570 = vmatpush1.bf16.msra.mxu0 %v549
    %571 = vmatprep.subr.bf16.mxu0 0
    %572 = vmatpush1.bf16.msra.mxu0 %v550
    %573 = vmatprep.subr.bf16.mxu0 0
    %574 = vmatpush1.bf16.msra.mxu0 %v551
    %575 = vmatprep.subr.bf16.mxu0 0
    %576 = vmatpush1.bf16.msra.mxu0 %v552
    %577 = vmatprep.subr.bf16.mxu0 0
    %578 = vmatpush1.bf16.msra.mxu0 0
    %579 = vmatprep.subr.bf16.mxu0 0
    %580 = vmatpush1.bf16.msra.mxu0 0
    %581 = vmatprep.subr.bf16.mxu0 0
    %582 = vmatpush1.bf16.msra.mxu0 0
    %583 = vmatprep.subr.bf16.mxu0 0
    %584 = vmatpush1.bf16.msra.mxu0 0
    %585 = vmatprep.subr.bf16.mxu0 0
    %586 = vmatpush1.bf16.msra.mxu0 0
    %587 = vmatprep.subr.bf16.mxu0 0
    %588 = vmatpush1.bf16.msra.mxu0 0
    %589 = vmatprep.subr.bf16.mxu0 0
    %590 = vmatpush1.bf16.msra.mxu0 0
    %591 = vmatprep.subr.bf16.mxu0 0
    %592 = vmatpush1.bf16.msra.mxu0 0
    %593 = vmatprep.mubr.bf16.mxu0 0
    %594 = vmatmul.mubr.bf16.gmra.mrb[0].mxu0 %v449
    %v595 = vpop.f32.mrb[0].mxu0
    %v596 = vadd.f32 0.0, %v595
    %v597 = vpop.f32.mrb[0].mxu0
    %v598 = vpop.f32.mrb[0].mxu0
    %v599 = vadd.f32 0.0, %v598
    %v600 = vpop.f32.mrb[0].mxu0
    %601 = vmatprep.mubr.bf16.mxu0 0
    %602 = vmatmul.mubr.bf16.gmra.mrb[0].mxu0 %v450
    %v603 = vpop.f32.mrb[0].mxu0
    %v604 = vadd.f32 0.0, %v603
    %v605 = vpop.f32.mrb[0].mxu0
    %v606 = vpop.f32.mrb[0].mxu0
    %v607 = vadd.f32 0.0, %v606
    %v608 = vpop.f32.mrb[0].mxu0
    %609 = vmatprep.mubr.bf16.mxu0 0
    %610 = vmatmul.mubr.bf16.gmra.mrb[0].mxu0 %v451
    %v611 = vpop.f32.mrb[0].mxu0
    %v612 = vadd.f32 0.0, %v611
    %v613 = vpop.f32.mrb[0].mxu0
    %v614 = vpop.f32.mrb[0].mxu0
    %v615 = vadd.f32 0.0, %v614
    %v616 = vpop.f32.mrb[0].mxu0
    %617 = vmatprep.mubr.bf16.mxu0 0
    %618 = vmatmul.mubr.bf16.gmra.mrb[0].mxu0 %v452
    %v619 = vpop.f32.mrb[0].mxu0
    %v620 = vadd.f32 0.0, %v619
    %v621 = vpop.f32.mrb[0].mxu0
    %v622 = vpop.f32.mrb[0].mxu0
    %v623 = vadd.f32 0.0, %v622
    %v624 = vpop.f32.mrb[0].mxu0
    %625 = vmatprep.mubr.bf16.mxu0 0
    %626 = vmatmul.mubr.bf16.gmra.mrb[0].mxu0 %v453
    %v627 = vpop.f32.mrb[0].mxu0
    %v628 = vadd.f32 0.0, %v627
    %v629 = vpop.f32.mrb[0].mxu0
    %v630 = vpop.f32.mrb[0].mxu0
    %v631 = vadd.f32 0.0, %v630
    %v632 = vpop.f32.mrb[0].mxu0
    %633 = vmatprep.mubr.bf16.mxu0 0
    %634 = vmatmul.mubr.bf16.gmra.mrb[0].mxu0 %v454
    %v635 = vpop.f32.mrb[0].mxu0
    %v636 = vadd.f32 0.0, %v635
    %v637 = vpop.f32.mrb[0].mxu0
    %v638 = vpop.f32.mrb[0].mxu0
    %v639 = vadd.f32 0.0, %v638
    %v640 = vpop.f32.mrb[0].mxu0
    %641 = vmatprep.mubr.bf16.mxu0 0
    %642 = vmatmul.mubr.bf16.gmra.mrb[0].mxu0 %v455
    %v643 = vpop.f32.mrb[0].mxu0
    %v644 = vadd.f32 0.0, %v643
    %v645 = vpop.f32.mrb[0].mxu0
    %v646 = vpop.f32.mrb[0].mxu0
    %v647 = vadd.f32 0.0, %v646
    %v648 = vpop.f32.mrb[0].mxu0
    %649 = vmatprep.mubr.bf16.mxu0 0
    %650 = vmatmul.mubr.bf16.gmra.mrb[0].mxu0 %v456
    %v651 = vpop.f32.mrb[0].mxu0
    %v652 = vadd.f32 0.0, %v651
    %v653 = vpop.f32.mrb[0].mxu0
    %v654 = vpop.f32.mrb[0].mxu0
    %v655 = vadd.f32 0.0, %v654
    %v656 = vpop.f32.mrb[0].mxu0
    %657 = vmatprep.mubr.bf16.mxu0 0
    %658 = vmatmul.mubr.bf16.gmra.mrb[0].mxu0 %v457
    %v659 = vpop.f32.mrb[0].mxu0
    %v660 = vadd.f32 0.0, %v659
    %v661 = vpop.f32.mrb[0].mxu0
    %v662 = vpop.f32.mrb[0].mxu0
    %v663 = vadd.f32 0.0, %v662
    %v664 = vpop.f32.mrb[0].mxu0
    %665 = vmatprep.mubr.bf16.mxu0 0
    %666 = vmatmul.mubr.bf16.gmra.mrb[0].mxu0 %v458
    %v667 = vpop.f32.mrb[0].mxu0
    %v668 = vadd.f32 0.0, %v667
    %v669 = vpop.f32.mrb[0].mxu0
    %v670 = vpop.f32.mrb[0].mxu0
    %v671 = vadd.f32 0.0, %v670
    %v672 = vpop.f32.mrb[0].mxu0
    %673 = vmatprep.mubr.bf16.mxu0 0
    %674 = vmatmul.mubr.bf16.gmra.mrb[0].mxu0 %v459
    %v675 = vpop.f32.mrb[0].mxu0
    %v676 = vadd.f32 0.0, %v675
    %v677 = vpop.f32.mrb[0].mxu0
    %v678 = vpop.f32.mrb[0].mxu0
    %v679 = vadd.f32 0.0, %v678
    %v680 = vpop.f32.mrb[0].mxu0
    %681 = vmatprep.mubr.bf16.mxu0 0
    %682 = vmatmul.mubr.bf16.gmra.mrb[0].mxu0 %v460
    %v683 = vpop.f32.mrb[0].mxu0
    %v684 = vadd.f32 0.0, %v683
    %v685 = vpop.f32.mrb[0].mxu0
    %v686 = vpop.f32.mrb[0].mxu0
    %v687 = vadd.f32 0.0, %v686
    %v688 = vpop.f32.mrb[0].mxu0
    %689 = vmatprep.mubr.bf16.mxu0 0
    %690 = vmatmul.mubr.bf16.gmra.mrb[0].mxu0 %v461
    %v691 = vpop.f32.mrb[0].mxu0
    %v692 = vadd.f32 0.0, %v691
    %v693 = vpop.f32.mrb[0].mxu0
    %v694 = vpop.f32.mrb[0].mxu0
    %v695 = vadd.f32 0.0, %v694
    %v696 = vpop.f32.mrb[0].mxu0
    %697 = vmatprep.mubr.bf16.mxu0 0
    %698 = vmatmul.mubr.bf16.gmra.mrb[0].mxu0 %v462
    %v699 = vpop.f32.mrb[0].mxu0
    %v700 = vadd.f32 0.0, %v699
    %v701 = vpop.f32.mrb[0].mxu0
    %v702 = vpop.f32.mrb[0].mxu0
    %v703 = vadd.f32 0.0, %v702
    %v704 = vpop.f32.mrb[0].mxu0
    %705 = vmatprep.mubr.bf16.mxu0 0
    %706 = vmatmul.mubr.bf16.gmra.mrb[0].mxu0 %v463
    %v707 = vpop.f32.mrb[0].mxu0
    %v708 = vadd.f32 0.0, %v707
    %v709 = vpop.f32.mrb[0].mxu0
    %v710 = vpop.f32.mrb[0].mxu0
    %v711 = vadd.f32 0.0, %v710
    %v712 = vpop.f32.mrb[0].mxu0
    %713 = vmatprep.mubr.bf16.mxu0 0
    %714 = vmatmul.mubr.bf16.gmra.mrb[0].mxu0 %v464
    %v715 = vpop.f32.mrb[0].mxu0
    %v716 = vadd.f32 0.0, %v715
    %v717 = vpop.f32.mrb[0].mxu0
    %v718 = vpop.f32.mrb[0].mxu0
    %v719 = vadd.f32 0.0, %v718
    %v720 = vpop.f32.mrb[0].mxu0
    %721 = vmatprep.mubr.bf16.mxu0 0
    %722 = vmatmul.mubr.bf16.gmra.mrb[0].mxu0 %v465
    %v723 = vpop.f32.mrb[0].mxu0
    %v724 = vadd.f32 0.0, %v723
    %v725 = vpop.f32.mrb[0].mxu0
    %v726 = vpop.f32.mrb[0].mxu0
    %v727 = vadd.f32 0.0, %v726
    %v728 = vpop.f32.mrb[0].mxu0
    %729 = vmatprep.mubr.bf16.mxu0 0
    %730 = vmatmul.mubr.bf16.gmra.mrb[0].mxu0 %v466
    %v731 = vpop.f32.mrb[0].mxu0
    %v732 = vadd.f32 0.0, %v731
    %v733 = vpop.f32.mrb[0].mxu0
    %v734 = vpop.f32.mrb[0].mxu0
    %v735 = vadd.f32 0.0, %v734
    %v736 = vpop.f32.mrb[0].mxu0
    %737 = vmatprep.mubr.bf16.mxu0 0
    %738 = vmatmul.mubr.bf16.gmra.mrb[0].mxu0 %v467
    %v739 = vpop.f32.mrb[0].mxu0
    %v740 = vadd.f32 0.0, %v739
    %v741 = vpop.f32.mrb[0].mxu0
    %v742 = vpop.f32.mrb[0].mxu0
    %v743 = vadd.f32 0.0, %v742
    %v744 = vpop.f32.mrb[0].mxu0
    %745 = vmatprep.mubr.bf16.mxu0 0
    %746 = vmatmul.mubr.bf16.gmra.mrb[0].mxu0 %v468
    %v747 = vpop.f32.mrb[0].mxu0
    %v748 = vadd.f32 0.0, %v747
    %v749 = vpop.f32.mrb[0].mxu0
    %v750 = vpop.f32.mrb[0].mxu0
    %v751 = vadd.f32 0.0, %v750
    %v752 = vpop.f32.mrb[0].mxu0
    %753 = vmatprep.mubr.bf16.mxu0 0
    %754 = vmatmul.mubr.bf16.gmra.mrb[0].mxu0 %v469
    %v755 = vpop.f32.mrb[0].mxu0
    %v756 = vadd.f32 0.0, %v755
    %v757 = vpop.f32.mrb[0].mxu0
    %v758 = vpop.f32.mrb[0].mxu0
    %v759 = vadd.f32 0.0, %v758
    %v760 = vpop.f32.mrb[0].mxu0
    %761 = vmatprep.mubr.bf16.mxu0 0
    %762 = vmatmul.mubr.bf16.gmra.mrb[0].mxu0 %v470
    %v763 = vpop.f32.mrb[0].mxu0
    %v764 = vadd.f32 0.0, %v763
    %v765 = vpop.f32.mrb[0].mxu0
    %v766 = vpop.f32.mrb[0].mxu0
    %v767 = vadd.f32 0.0, %v766
    %v768 = vpop.f32.mrb[0].mxu0
    %769 = vmatprep.mubr.bf16.mxu0 0
    %770 = vmatmul.mubr.bf16.gmra.mrb[0].mxu0 %v471
    %v771 = vpop.f32.mrb[0].mxu0
    %v772 = vadd.f32 0.0, %v771
    %v773 = vpop.f32.mrb[0].mxu0
    %v774 = vpop.f32.mrb[0].mxu0
    %v775 = vadd.f32 0.0, %v774
    %v776 = vpop.f32.mrb[0].mxu0
    %777 = vmatprep.mubr.bf16.mxu0 0
    %778 = vmatmul.mubr.bf16.gmra.mrb[0].mxu0 %v472
    %v779 = vpop.f32.mrb[0].mxu0
    %v780 = vadd.f32 0.0, %v779
    %v781 = vpop.f32.mrb[0].mxu0
    %v782 = vpop.f32.mrb[0].mxu0
    %v783 = vadd.f32 0.0, %v782
    %v784 = vpop.f32.mrb[0].mxu0
    %785 = vmatprep.mubr.bf16.mxu0 0
    %786 = vmatmul.mubr.bf16.gmra.mrb[0].mxu0 %v473
    %v787 = vpop.f32.mrb[0].mxu0
    %v788 = vadd.f32 0.0, %v787
    %v789 = vpop.f32.mrb[0].mxu0
    %v790 = vpop.f32.mrb[0].mxu0
    %v791 = vadd.f32 0.0, %v790
    %v792 = vpop.f32.mrb[0].mxu0
    %793 = vmatprep.mubr.bf16.mxu0 0
    %794 = vmatmul.mubr.bf16.gmra.mrb[0].mxu0 %v474
    %v795 = vpop.f32.mrb[0].mxu0
    %v796 = vadd.f32 0.0, %v795
    %v797 = vpop.f32.mrb[0].mxu0
    %v798 = vpop.f32.mrb[0].mxu0
    %v799 = vadd.f32 0.0, %v798
    %v800 = vpop.f32.mrb[0].mxu0
    %801 = vmatprep.mubr.bf16.mxu0 0
    %802 = vmatmul.mubr.bf16.gmra.mrb[0].mxu0 %v475
    %v803 = vpop.f32.mrb[0].mxu0
    %v804 = vadd.f32 0.0, %v803
    %v805 = vpop.f32.mrb[0].mxu0
    %v806 = vpop.f32.mrb[0].mxu0
    %v807 = vadd.f32 0.0, %v806
    %v808 = vpop.f32.mrb[0].mxu0
    %809 = vmatprep.mubr.bf16.mxu0 0
    %810 = vmatmul.mubr.bf16.gmra.mrb[0].mxu0 %v476
    %v811 = vpop.f32.mrb[0].mxu0
    %v812 = vadd.f32 0.0, %v811
    %v813 = vpop.f32.mrb[0].mxu0
    %v814 = vpop.f32.mrb[0].mxu0
    %v815 = vadd.f32 0.0, %v814
    %v816 = vpop.f32.mrb[0].mxu0
    %817 = vmatprep.mubr.bf16.mxu0 0
    %818 = vmatmul.mubr.bf16.gmra.mrb[0].mxu0 %v477
    %v819 = vpop.f32.mrb[0].mxu0
    %v820 = vadd.f32 0.0, %v819
    %v821 = vpop.f32.mrb[0].mxu0
    %v822 = vpop.f32.mrb[0].mxu0
    %v823 = vadd.f32 0.0, %v822
    %v824 = vpop.f32.mrb[0].mxu0
    %825 = vmatprep.mubr.bf16.mxu0 0
    %826 = vmatmul.mubr.bf16.gmra.mrb[0].mxu0 %v478
    %v827 = vpop.f32.mrb[0].mxu0
    %v828 = vadd.f32 0.0, %v827
    %v829 = vpop.f32.mrb[0].mxu0
    %v830 = vpop.f32.mrb[0].mxu0
    %v831 = vadd.f32 0.0, %v830
    %v832 = vpop.f32.mrb[0].mxu0
    %833 = vmatprep.mubr.bf16.mxu0 0
    %834 = vmatmul.mubr.bf16.gmra.mrb[0].mxu0 %v479
    %v835 = vpop.f32.mrb[0].mxu0
    %v836 = vadd.f32 0.0, %v835
    %v837 = vpop.f32.mrb[0].mxu0
    %v838 = vpop.f32.mrb[0].mxu0
    %v839 = vadd.f32 0.0, %v838
    %v840 = vpop.f32.mrb[0].mxu0
    %841 = vmatprep.mubr.bf16.mxu0 0
    %842 = vmatmul.mubr.bf16.gmra.mrb[0].mxu0 %v480
    %v843 = vpop.f32.mrb[0].mxu0
    %v844 = vadd.f32 0.0, %v843
    %v845 = vpop.f32.mrb[0].mxu0
    %v846 = vpop.f32.mrb[0].mxu0
    %v847 = vadd.f32 0.0, %v846
    %v848 = vpop.f32.mrb[0].mxu0
    %849 = vdwg.mxu0
    %v850 = vadd.f32 %v241, %v596
    %v851 = vadd.f32 %v242, %v599
    %v852 = vadd.f32 %v243, %v604
    %v853 = vadd.f32 %v244, %v607
    %v854 = vadd.f32 %v245, %v612
    %v855 = vadd.f32 %v246, %v615
    %v856 = vadd.f32 %v247, %v620
    %v857 = vadd.f32 %v248, %v623
    %v858 = vadd.f32 %v249, %v628
    %v859 = vadd.f32 %v250, %v631
    %v860 = vadd.f32 %v251, %v636
    %v861 = vadd.f32 %v252, %v639
    %v862 = vadd.f32 %v253, %v644
    %v863 = vadd.f32 %v254, %v647
    %v864 = vadd.f32 %v255, %v652
    %v865 = vadd.f32 %v256, %v655
    %v866 = vadd.f32 %v257, %v660
    %v867 = vadd.f32 %v258, %v663
    %v868 = vadd.f32 %v259, %v668
    %v869 = vadd.f32 %v260, %v671
    %v870 = vadd.f32 %v261, %v676
    %v871 = vadd.f32 %v262, %v679
    %v872 = vadd.f32 %v263, %v684
    %v873 = vadd.f32 %v264, %v687
    %v874 = vadd.f32 %v265, %v692
    %v875 = vadd.f32 %v266, %v695
    %v876 = vadd.f32 %v267, %v700
    %v877 = vadd.f32 %v268, %v703
    %v878 = vadd.f32 %v269, %v708
    %v879 = vadd.f32 %v270, %v711
    %v880 = vadd.f32 %v271, %v716
    %v881 = vadd.f32 %v272, %v719
    %v882 = vadd.f32 %v273, %v724
    %v883 = vadd.f32 %v274, %v727
    %v884 = vadd.f32 %v275, %v732
    %v885 = vadd.f32 %v276, %v735
    %v886 = vadd.f32 %v277, %v740
    %v887 = vadd.f32 %v278, %v743
    %v888 = vadd.f32 %v279, %v748
    %v889 = vadd.f32 %v280, %v751
    %v890 = vadd.f32 %v281, %v756
    %v891 = vadd.f32 %v282, %v759
    %v892 = vadd.f32 %v283, %v764
    %v893 = vadd.f32 %v284, %v767
    %v894 = vadd.f32 %v285, %v772
    %v895 = vadd.f32 %v286, %v775
    %v896 = vadd.f32 %v287, %v780
    %v897 = vadd.f32 %v288, %v783
    %v898 = vadd.f32 %v289, %v788
    %v899 = vadd.f32 %v290, %v791
    %v900 = vadd.f32 %v291, %v796
    %v901 = vadd.f32 %v292, %v799
    %v902 = vadd.f32 %v293, %v804
    %v903 = vadd.f32 %v294, %v807
    %v904 = vadd.f32 %v295, %v812
    %v905 = vadd.f32 %v296, %v815
    %v906 = vadd.f32 %v297, %v820
    %v907 = vadd.f32 %v298, %v823
    %v908 = vadd.f32 %v299, %v828
    %v909 = vadd.f32 %v300, %v831
    %v910 = vadd.f32 %v301, %v836
    %v911 = vadd.f32 %v302, %v839
    %v912 = vadd.f32 %v303, %v844
    %v913 = vadd.f32 %v304, %v847
    %914 = vst [vmem:[#allocation2] sm:$0xff] %v850
    %915 = vst [vmem:[#allocation2 + $0x8] sm:$0xff] %v851
    %916 = vst [vmem:[#allocation2 + $0x10] sm:$0xff] %v852
    %917 = vst [vmem:[#allocation2 + $0x18] sm:$0xff] %v853
    %918 = vst [vmem:[#allocation2 + $0x20] sm:$0xff] %v854
    %919 = vst [vmem:[#allocation2 + $0x28] sm:$0xff] %v855
    %920 = vst [vmem:[#allocation2 + $0x30] sm:$0xff] %v856
    %921 = vst [vmem:[#allocation2 + $0x38] sm:$0xff] %v857
    %922 = vst [vmem:[#allocation2 + $0x40] sm:$0xff] %v858
    %923 = vst [vmem:[#allocation2 + $0x48] sm:$0xff] %v859
    %924 = vst [vmem:[#allocation2 + $0x50] sm:$0xff] %v860
    %925 = vst [vmem:[#allocation2 + $0x58] sm:$0xff] %v861
    %926 = vst [vmem:[#allocation2 + $0x60] sm:$0xff] %v862
    %927 = vst [vmem:[#allocation2 + $0x68] sm:$0xff] %v863
    %928 = vst [vmem:[#allocation2 + $0x70] sm:$0xff] %v864
    %929 = vst [vmem:[#allocation2 + $0x78] sm:$0xff] %v865
    %930 = vst [vmem:[#allocation2 + $0x80] sm:$0xff] %v866
    %931 = vst [vmem:[#allocation2 + $0x88] sm:$0xff] %v867
    %932 = vst [vmem:[#allocation2 + $0x90] sm:$0xff] %v868
    %933 = vst [vmem:[#allocation2 + $0x98] sm:$0xff] %v869
    %934 = vst [vmem:[#allocation2 + $0xa0] sm:$0xff] %v870
    %935 = vst [vmem:[#allocation2 + $0xa8] sm:$0xff] %v871
    %936 = vst [vmem:[#allocation2 + $0xb0] sm:$0xff] %v872
    %937 = vst [vmem:[#allocation2 + $0xb8] sm:$0xff] %v873
    %938 = vst [vmem:[#allocation2 + $0xc0] sm:$0xff] %v874
    %939 = vst [vmem:[#allocation2 + $0xc8] sm:$0xff] %v875
    %940 = vst [vmem:[#allocation2 + $0xd0] sm:$0xff] %v876
    %941 = vst [vmem:[#allocation2 + $0xd8] sm:$0xff] %v877
    %942 = vst [vmem:[#allocation2 + $0xe0] sm:$0xff] %v878
    %943 = vst [vmem:[#allocation2 + $0xe8] sm:$0xff] %v879
    %944 = vst [vmem:[#allocation2 + $0xf0] sm:$0xff] %v880
    %945 = vst [vmem:[#allocation2 + $0xf8] sm:$0xff] %v881
    %946 = vst [vmem:[#allocation2 + $0x100] sm:$0xff] %v882
    %947 = vst [vmem:[#allocation2 + $0x108] sm:$0xff] %v883
    %948 = vst [vmem:[#allocation2 + $0x110] sm:$0xff] %v884
    %949 = vst [vmem:[#allocation2 + $0x118] sm:$0xff] %v885
    %950 = vst [vmem:[#allocation2 + $0x120] sm:$0xff] %v886
    %951 = vst [vmem:[#allocation2 + $0x128] sm:$0xff] %v887
    %952 = vst [vmem:[#allocation2 + $0x130] sm:$0xff] %v888
    %953 = vst [vmem:[#allocation2 + $0x138] sm:$0xff] %v889
    %954 = vst [vmem:[#allocation2 + $0x140] sm:$0xff] %v890
    %955 = vst [vmem:[#allocation2 + $0x148] sm:$0xff] %v891
    %956 = vst [vmem:[#allocation2 + $0x150] sm:$0xff] %v892
    %957 = vst [vmem:[#allocation2 + $0x158] sm:$0xff] %v893
    %958 = vst [vmem:[#allocation2 + $0x160] sm:$0xff] %v894
    %959 = vst [vmem:[#allocation2 + $0x168] sm:$0xff] %v895
    %960 = vst [vmem:[#allocation2 + $0x170] sm:$0xff] %v896
    %961 = vst [vmem:[#allocation2 + $0x178] sm:$0xff] %v897
    %962 = vst [vmem:[#allocation2 + $0x180] sm:$0xff] %v898
    %963 = vst [vmem:[#allocation2 + $0x188] sm:$0xff] %v899
    %964 = vst [vmem:[#allocation2 + $0x190] sm:$0xff] %v900
    %965 = vst [vmem:[#allocation2 + $0x198] sm:$0xff] %v901
    %966 = vst [vmem:[#allocation2 + $0x1a0] sm:$0xff] %v902
    %967 = vst [vmem:[#allocation2 + $0x1a8] sm:$0xff] %v903
    %968 = vst [vmem:[#allocation2 + $0x1b0] sm:$0xff] %v904
    %969 = vst [vmem:[#allocation2 + $0x1b8] sm:$0xff] %v905
    %970 = vst [vmem:[#allocation2 + $0x1c0] sm:$0xff] %v906
    %971 = vst [vmem:[#allocation2 + $0x1c8] sm:$0xff] %v907
    %972 = vst [vmem:[#allocation2 + $0x1d0] sm:$0xff] %v908
    %973 = vst [vmem:[#allocation2 + $0x1d8] sm:$0xff] %v909
    %974 = vst [vmem:[#allocation2 + $0x1e0] sm:$0xff] %v910
    %975 = vst [vmem:[#allocation2 + $0x1e8] sm:$0xff] %v911
    %976 = vst [vmem:[#allocation2 + $0x1f0] sm:$0xff] %v912
    %977 = vst [vmem:[#allocation2 + $0x1f8] sm:$0xff] %v913
    // Predicated region
    $region22: #{tpu_custom_call.1} parent=1 // pred_check
      %p978 = pneg %p45
    $region23: #{tpu_custom_call.1} parent=1 // pred_check_branch
      %980 = sbr.rel (%p978) target = $region25
    $region24: #{tpu_custom_call.1} parent=1 // pred_region
      %v981 = vld [vmem:[#allocation2] sm:$0xff]
      %v982 = vld [vmem:[#allocation2 + $0x8] sm:$0xff]
      %v983 = vld [vmem:[#allocation2 + $0x10] sm:$0xff]
      %v984 = vld [vmem:[#allocation2 + $0x18] sm:$0xff]
      %v985 = vld [vmem:[#allocation2 + $0x20] sm:$0xff]
      %v986 = vld [vmem:[#allocation2 + $0x28] sm:$0xff]
      %v987 = vld [vmem:[#allocation2 + $0x30] sm:$0xff]
      %v988 = vld [vmem:[#allocation2 + $0x38] sm:$0xff]
      %v989 = vld [vmem:[#allocation2 + $0x40] sm:$0xff]
      %v990 = vld [vmem:[#allocation2 + $0x48] sm:$0xff]
      %v991 = vld [vmem:[#allocation2 + $0x50] sm:$0xff]
      %v992 = vld [vmem:[#allocation2 + $0x58] sm:$0xff]
      %v993 = vld [vmem:[#allocation2 + $0x60] sm:$0xff]
      %v994 = vld [vmem:[#allocation2 + $0x68] sm:$0xff]
      %v995 = vld [vmem:[#allocation2 + $0x70] sm:$0xff]
      %v996 = vld [vmem:[#allocation2 + $0x78] sm:$0xff]
      %v997 = vld [vmem:[#allocation2 + $0x80] sm:$0xff]
      %v998 = vld [vmem:[#allocation2 + $0x88] sm:$0xff]
      %v999 = vld [vmem:[#allocation2 + $0x90] sm:$0xff]
      %v1000 = vld [vmem:[#allocation2 + $0x98] sm:$0xff]
      %v1001 = vld [vmem:[#allocation2 + $0xa0] sm:$0xff]
      %v1002 = vld [vmem:[#allocation2 + $0xa8] sm:$0xff]
      %v1003 = vld [vmem:[#allocation2 + $0xb0] sm:$0xff]
      %v1004 = vld [vmem:[#allocation2 + $0xb8] sm:$0xff]
      %v1005 = vld [vmem:[#allocation2 + $0xc0] sm:$0xff]
      %v1006 = vld [vmem:[#allocation2 + $0xc8] sm:$0xff]
      %v1007 = vld [vmem:[#allocation2 + $0xd0] sm:$0xff]
      %v1008 = vld [vmem:[#allocation2 + $0xd8] sm:$0xff]
      %v1009 = vld [vmem:[#allocation2 + $0xe0] sm:$0xff]
      %v1010 = vld [vmem:[#allocation2 + $0xe8] sm:$0xff]
      %v1011 = vld [vmem:[#allocation2 + $0xf0] sm:$0xff]
      %v1012 = vld [vmem:[#allocation2 + $0xf8] sm:$0xff]
      %v1013 = vld [vmem:[#allocation2 + $0x100] sm:$0xff]
      %v1014 = vld [vmem:[#allocation2 + $0x108] sm:$0xff]
      %v1015 = vld [vmem:[#allocation2 + $0x110] sm:$0xff]
      %v1016 = vld [vmem:[#allocation2 + $0x118] sm:$0xff]
      %v1017 = vld [vmem:[#allocation2 + $0x120] sm:$0xff]
      %v1018 = vld [vmem:[#allocation2 + $0x128] sm:$0xff]
      %v1019 = vld [vmem:[#allocation2 + $0x130] sm:$0xff]
      %v1020 = vld [vmem:[#allocation2 + $0x138] sm:$0xff]
      %v1021 = vld [vmem:[#allocation2 + $0x140] sm:$0xff]
      %v1022 = vld [vmem:[#allocation2 + $0x148] sm:$0xff]
      %v1023 = vld [vmem:[#allocation2 + $0x150] sm:$0xff]
      %v1024 = vld [vmem:[#allocation2 + $0x158] sm:$0xff]
      %v1025 = vld [vmem:[#allocation2 + $0x160] sm:$0xff]
      %v1026 = vld [vmem:[#allocation2 + $0x168] sm:$0xff]
      %v1027 = vld [vmem:[#allocation2 + $0x170] sm:$0xff]
      %v1028 = vld [vmem:[#allocation2 + $0x178] sm:$0xff]
      %v1029 = vld [vmem:[#allocation2 + $0x180] sm:$0xff]
      %v1030 = vld [vmem:[#allocation2 + $0x188] sm:$0xff]
      %v1031 = vld [vmem:[#allocation2 + $0x190] sm:$0xff]
      %v1032 = vld [vmem:[#allocation2 + $0x198] sm:$0xff]
      %v1033 = vld [vmem:[#allocation2 + $0x1a0] sm:$0xff]
      %v1034 = vld [vmem:[#allocation2 + $0x1a8] sm:$0xff]
      %v1035 = vld [vmem:[#allocation2 + $0x1b0] sm:$0xff]
      %v1036 = vld [vmem:[#allocation2 + $0x1b8] sm:$0xff]
      %v1037 = vld [vmem:[#allocation2 + $0x1c0] sm:$0xff]
      %v1038 = vld [vmem:[#allocation2 + $0x1c8] sm:$0xff]
      %v1039 = vld [vmem:[#allocation2 + $0x1d0] sm:$0xff]
      %v1040 = vld [vmem:[#allocation2 + $0x1d8] sm:$0xff]
      %v1041 = vld [vmem:[#allocation2 + $0x1e0] sm:$0xff]
      %v1042 = vld [vmem:[#allocation2 + $0x1e8] sm:$0xff]
      %v1043 = vld [vmem:[#allocation2 + $0x1f0] sm:$0xff]
      %v1044 = vld [vmem:[#allocation2 + $0x1f8] sm:$0xff]
      %v1045 = vpack.c.bf16 %v982, %v981
      %v1046 = vpack.c.bf16 %v984, %v983
      %v1047 = vpack.c.bf16 %v986, %v985
      %v1048 = vpack.c.bf16 %v988, %v987
      %v1049 = vpack.c.bf16 %v990, %v989
      %v1050 = vpack.c.bf16 %v992, %v991
      %v1051 = vpack.c.bf16 %v994, %v993
      %v1052 = vpack.c.bf16 %v996, %v995
      %v1053 = vpack.c.bf16 %v998, %v997
      %v1054 = vpack.c.bf16 %v1000, %v999
      %v1055 = vpack.c.bf16 %v1002, %v1001
      %v1056 = vpack.c.bf16 %v1004, %v1003
      %v1057 = vpack.c.bf16 %v1006, %v1005
      %v1058 = vpack.c.bf16 %v1008, %v1007
      %v1059 = vpack.c.bf16 %v1010, %v1009
      %v1060 = vpack.c.bf16 %v1012, %v1011
      %v1061 = vpack.c.bf16 %v1014, %v1013
      %v1062 = vpack.c.bf16 %v1016, %v1015
      %v1063 = vpack.c.bf16 %v1018, %v1017
      %v1064 = vpack.c.bf16 %v1020, %v1019
      %v1065 = vpack.c.bf16 %v1022, %v1021
      %v1066 = vpack.c.bf16 %v1024, %v1023
      %v1067 = vpack.c.bf16 %v1026, %v1025
      %v1068 = vpack.c.bf16 %v1028, %v1027
      %v1069 = vpack.c.bf16 %v1030, %v1029
      %v1070 = vpack.c.bf16 %v1032, %v1031
      %v1071 = vpack.c.bf16 %v1034, %v1033
      %v1072 = vpack.c.bf16 %v1036, %v1035
      %v1073 = vpack.c.bf16 %v1038, %v1037
      %v1074 = vpack.c.bf16 %v1040, %v1039
      %v1075 = vpack.c.bf16 %v1042, %v1041
      %v1076 = vpack.c.bf16 %v1044, %v1043
      %v1109 = vunpack.c.l.b16 %v1045
      %v1110 = vunpack.c.h.b16 %v1045
      %v1111 = vunpack.c.l.b16 %v1046
      %v1112 = vunpack.c.h.b16 %v1046
      %v1113 = vunpack.c.l.b16 %v1047
      %v1114 = vunpack.c.h.b16 %v1047
      %v1115 = vunpack.c.l.b16 %v1048
      %v1116 = vunpack.c.h.b16 %v1048
      %v1117 = vunpack.c.l.b16 %v1049
      %v1118 = vunpack.c.h.b16 %v1049
      %v1119 = vunpack.c.l.b16 %v1050
      %v1120 = vunpack.c.h.b16 %v1050
      %v1121 = vunpack.c.l.b16 %v1051
      %v1122 = vunpack.c.h.b16 %v1051
      %v1123 = vunpack.c.l.b16 %v1052
      %v1124 = vunpack.c.h.b16 %v1052
      %v1125 = vunpack.c.l.b16 %v1053
      %v1126 = vunpack.c.h.b16 %v1053
      %v1127 = vunpack.c.l.b16 %v1054
      %v1128 = vunpack.c.h.b16 %v1054
      %v1129 = vunpack.c.l.b16 %v1055
      %v1130 = vunpack.c.h.b16 %v1055
      %v1131 = vunpack.c.l.b16 %v1056
      %v1132 = vunpack.c.h.b16 %v1056
      %v1133 = vunpack.c.l.b16 %v1057
      %v1134 = vunpack.c.h.b16 %v1057
      %v1135 = vunpack.c.l.b16 %v1058
      %v1136 = vunpack.c.h.b16 %v1058
      %v1137 = vunpack.c.l.b16 %v1059
      %v1138 = vunpack.c.h.b16 %v1059
      %v1139 = vunpack.c.l.b16 %v1060
      %v1140 = vunpack.c.h.b16 %v1060
      %v1141 = vunpack.c.l.b16 %v1061
      %v1142 = vunpack.c.h.b16 %v1061
      %v1143 = vunpack.c.l.b16 %v1062
      %v1144 = vunpack.c.h.b16 %v1062
      %v1145 = vunpack.c.l.b16 %v1063
      %v1146 = vunpack.c.h.b16 %v1063
      %v1147 = vunpack.c.l.b16 %v1064
      %v1148 = vunpack.c.h.b16 %v1064
      %v1149 = vunpack.c.l.b16 %v1065
      %v1150 = vunpack.c.h.b16 %v1065
      %v1151 = vunpack.c.l.b16 %v1066
      %v1152 = vunpack.c.h.b16 %v1066
      %v1153 = vunpack.c.l.b16 %v1067
      %v1154 = vunpack.c.h.b16 %v1067
      %v1155 = vunpack.c.l.b16 %v1068
      %v1156 = vunpack.c.h.b16 %v1068
      %v1157 = vunpack.c.l.b16 %v1069
      %v1158 = vunpack.c.h.b16 %v1069
      %v1159 = vunpack.c.l.b16 %v1070
      %v1160 = vunpack.c.h.b16 %v1070
      %v1161 = vunpack.c.l.b16 %v1071
      %v1162 = vunpack.c.h.b16 %v1071
      %v1163 = vunpack.c.l.b16 %v1072
      %v1164 = vunpack.c.h.b16 %v1072
      %v1165 = vunpack.c.l.b16 %v1073
      %v1166 = vunpack.c.h.b16 %v1073
      %v1167 = vunpack.c.l.b16 %v1074
      %v1168 = vunpack.c.h.b16 %v1074
      %v1169 = vunpack.c.l.b16 %v1075
      %v1170 = vunpack.c.h.b16 %v1075
      %v1171 = vunpack.c.l.b16 %v1076
      %v1172 = vunpack.c.h.b16 %v1076
      %v1173 = vpack.c.b16 %v1109, %v1109
      %v1174 = vpack.c.b16 %v1110, %v1110
      %v1175 = vpack.c.b16 %v1111, %v1111
      %v1176 = vpack.c.b16 %v1112, %v1112
      %v1177 = vpack.c.b16 %v1113, %v1113
      %v1178 = vpack.c.b16 %v1114, %v1114
      %v1179 = vpack.c.b16 %v1115, %v1115
      %v1180 = vpack.c.b16 %v1116, %v1116
      %v1181 = vpack.c.b16 %v1117, %v1117
      %v1182 = vpack.c.b16 %v1118, %v1118
      %v1183 = vpack.c.b16 %v1119, %v1119
      %v1184 = vpack.c.b16 %v1120, %v1120
      %v1185 = vpack.c.b16 %v1121, %v1121
      %v1186 = vpack.c.b16 %v1122, %v1122
      %v1187 = vpack.c.b16 %v1123, %v1123
      %v1188 = vpack.c.b16 %v1124, %v1124
      %v1189 = vpack.c.b16 %v1125, %v1125
      %v1190 = vpack.c.b16 %v1126, %v1126
      %v1191 = vpack.c.b16 %v1127, %v1127
      %v1192 = vpack.c.b16 %v1128, %v1128
      %v1193 = vpack.c.b16 %v1129, %v1129
      %v1194 = vpack.c.b16 %v1130, %v1130
      %v1195 = vpack.c.b16 %v1131, %v1131
      %v1196 = vpack.c.b16 %v1132, %v1132
      %v1197 = vpack.c.b16 %v1133, %v1133
      %v1198 = vpack.c.b16 %v1134, %v1134
      %v1199 = vpack.c.b16 %v1135, %v1135
      %v1200 = vpack.c.b16 %v1136, %v1136
      %v1201 = vpack.c.b16 %v1137, %v1137
      %v1202 = vpack.c.b16 %v1138, %v1138
      %v1203 = vpack.c.b16 %v1139, %v1139
      %v1204 = vpack.c.b16 %v1140, %v1140
      %v1205 = vpack.c.b16 %v1141, %v1141
      %v1206 = vpack.c.b16 %v1142, %v1142
      %v1207 = vpack.c.b16 %v1143, %v1143
      %v1208 = vpack.c.b16 %v1144, %v1144
      %v1209 = vpack.c.b16 %v1145, %v1145
      %v1210 = vpack.c.b16 %v1146, %v1146
      %v1211 = vpack.c.b16 %v1147, %v1147
      %v1212 = vpack.c.b16 %v1148, %v1148
      %v1213 = vpack.c.b16 %v1149, %v1149
      %v1214 = vpack.c.b16 %v1150, %v1150
      %v1215 = vpack.c.b16 %v1151, %v1151
      %v1216 = vpack.c.b16 %v1152, %v1152
      %v1217 = vpack.c.b16 %v1153, %v1153
      %v1218 = vpack.c.b16 %v1154, %v1154
      %v1219 = vpack.c.b16 %v1155, %v1155
      %v1220 = vpack.c.b16 %v1156, %v1156
      %v1221 = vpack.c.b16 %v1157, %v1157
      %v1222 = vpack.c.b16 %v1158, %v1158
      %v1223 = vpack.c.b16 %v1159, %v1159
      %v1224 = vpack.c.b16 %v1160, %v1160
      %v1225 = vpack.c.b16 %v1161, %v1161
      %v1226 = vpack.c.b16 %v1162, %v1162
      %v1227 = vpack.c.b16 %v1163, %v1163
      %v1228 = vpack.c.b16 %v1164, %v1164
      %v1229 = vpack.c.b16 %v1165, %v1165
      %v1230 = vpack.c.b16 %v1166, %v1166
      %v1231 = vpack.c.b16 %v1167, %v1167
      %v1232 = vpack.c.b16 %v1168, %v1168
      %v1233 = vpack.c.b16 %v1169, %v1169
      %v1234 = vpack.c.b16 %v1170, %v1170
      %v1235 = vpack.c.b16 %v1171, %v1171
      %v1236 = vpack.c.b16 %v1172, %v1172
      %1301 = vst [vmem:[#allocation8] sm:$0xf] %v1173
      %1302 = vst [vmem:[#allocation8 + $0x4] sm:$0xf] %v1174
      %1303 = vst [vmem:[#allocation8 + $0x8] sm:$0xf] %v1175
      %1304 = vst [vmem:[#allocation8 + $0xc] sm:$0xf] %v1176
      %1305 = vst [vmem:[#allocation8 + $0x10] sm:$0xf] %v1177
      %1306 = vst [vmem:[#allocation8 + $0x14] sm:$0xf] %v1178
      %1307 = vst [vmem:[#allocation8 + $0x18] sm:$0xf] %v1179
      %1308 = vst [vmem:[#allocation8 + $0x1c] sm:$0xf] %v1180
      %1309 = vst [vmem:[#allocation8 + $0x20] sm:$0xf] %v1181
      %1310 = vst [vmem:[#allocation8 + $0x24] sm:$0xf] %v1182
      %1311 = vst [vmem:[#allocation8 + $0x28] sm:$0xf] %v1183
      %1312 = vst [vmem:[#allocation8 + $0x2c] sm:$0xf] %v1184
      %1313 = vst [vmem:[#allocation8 + $0x30] sm:$0xf] %v1185
      %1314 = vst [vmem:[#allocation8 + $0x34] sm:$0xf] %v1186
      %1315 = vst [vmem:[#allocation8 + $0x38] sm:$0xf] %v1187
      %1316 = vst [vmem:[#allocation8 + $0x3c] sm:$0xf] %v1188
      %1317 = vst [vmem:[#allocation8 + $0x40] sm:$0xf] %v1189
      %1318 = vst [vmem:[#allocation8 + $0x44] sm:$0xf] %v1190
      %1319 = vst [vmem:[#allocation8 + $0x48] sm:$0xf] %v1191
      %1320 = vst [vmem:[#allocation8 + $0x4c] sm:$0xf] %v1192
      %1321 = vst [vmem:[#allocation8 + $0x50] sm:$0xf] %v1193
      %1322 = vst [vmem:[#allocation8 + $0x54] sm:$0xf] %v1194
      %1323 = vst [vmem:[#allocation8 + $0x58] sm:$0xf] %v1195
      %1324 = vst [vmem:[#allocation8 + $0x5c] sm:$0xf] %v1196
      %1325 = vst [vmem:[#allocation8 + $0x60] sm:$0xf] %v1197
      %1326 = vst [vmem:[#allocation8 + $0x64] sm:$0xf] %v1198
      %1327 = vst [vmem:[#allocation8 + $0x68] sm:$0xf] %v1199
      %1328 = vst [vmem:[#allocation8 + $0x6c] sm:$0xf] %v1200
      %1329 = vst [vmem:[#allocation8 + $0x70] sm:$0xf] %v1201
      %1330 = vst [vmem:[#allocation8 + $0x74] sm:$0xf] %v1202
      %1331 = vst [vmem:[#allocation8 + $0x78] sm:$0xf] %v1203
      %1332 = vst [vmem:[#allocation8 + $0x7c] sm:$0xf] %v1204
      %1333 = vst [vmem:[#allocation8 + $0x80] sm:$0xf] %v1205
      %1334 = vst [vmem:[#allocation8 + $0x84] sm:$0xf] %v1206
      %1335 = vst [vmem:[#allocation8 + $0x88] sm:$0xf] %v1207
      %1336 = vst [vmem:[#allocation8 + $0x8c] sm:$0xf] %v1208
      %1337 = vst [vmem:[#allocation8 + $0x90] sm:$0xf] %v1209
      %1338 = vst [vmem:[#allocation8 + $0x94] sm:$0xf] %v1210
      %1339 = vst [vmem:[#allocation8 + $0x98] sm:$0xf] %v1211
      %1340 = vst [vmem:[#allocation8 + $0x9c] sm:$0xf] %v1212
      %1341 = vst [vmem:[#allocation8 + $0xa0] sm:$0xf] %v1213
      %1342 = vst [vmem:[#allocation8 + $0xa4] sm:$0xf] %v1214
      %1343 = vst [vmem:[#allocation8 + $0xa8] sm:$0xf] %v1215
      %1344 = vst [vmem:[#allocation8 + $0xac] sm:$0xf] %v1216
      %1345 = vst [vmem:[#allocation8 + $0xb0] sm:$0xf] %v1217
      %1346 = vst [vmem:[#allocation8 + $0xb4] sm:$0xf] %v1218
      %1347 = vst [vmem:[#allocation8 + $0xb8] sm:$0xf] %v1219
      %1348 = vst [vmem:[#allocation8 + $0xbc] sm:$0xf] %v1220
      %1349 = vst [vmem:[#allocation8 + $0xc0] sm:$0xf] %v1221
      %1350 = vst [vmem:[#allocation8 + $0xc4] sm:$0xf] %v1222
      %1351 = vst [vmem:[#allocation8 + $0xc8] sm:$0xf] %v1223
      %1352 = vst [vmem:[#allocation8 + $0xcc] sm:$0xf] %v1224
      %1353 = vst [vmem:[#allocation8 + $0xd0] sm:$0xf] %v1225
      %1354 = vst [vmem:[#allocation8 + $0xd4] sm:$0xf] %v1226
      %1355 = vst [vmem:[#allocation8 + $0xd8] sm:$0xf] %v1227
      %1356 = vst [vmem:[#allocation8 + $0xdc] sm:$0xf] %v1228
      %1357 = vst [vmem:[#allocation8 + $0xe0] sm:$0xf] %v1229
      %1358 = vst [vmem:[#allocation8 + $0xe4] sm:$0xf] %v1230
      %1359 = vst [vmem:[#allocation8 + $0xe8] sm:$0xf] %v1231
      %1360 = vst [vmem:[#allocation8 + $0xec] sm:$0xf] %v1232
      %1361 = vst [vmem:[#allocation8 + $0xf0] sm:$0xf] %v1233
      %1362 = vst [vmem:[#allocation8 + $0xf4] sm:$0xf] %v1234
      %1363 = vst [vmem:[#allocation8 + $0xf8] sm:$0xf] %v1235
      %1364 = vst [vmem:[#allocation8 + $0xfc] sm:$0xf] %v1236
      %v1365 = vadd.f32 %v981, %v982
      %v1366 = vadd.f32 %v1365, %v983
      %v1367 = vadd.f32 %v1366, %v984
      %v1368 = vadd.f32 %v1367, %v985
      %v1369 = vadd.f32 %v1368, %v986
      %v1370 = vadd.f32 %v1369, %v987
      %v1371 = vadd.f32 %v1370, %v988
      %v1372 = vadd.f32 %v1371, %v989
      %v1373 = vadd.f32 %v1372, %v990
      %v1374 = vadd.f32 %v1373, %v991
      %v1375 = vadd.f32 %v1374, %v992
      %v1376 = vadd.f32 %v1375, %v993
      %v1377 = vadd.f32 %v1376, %v994
      %v1378 = vadd.f32 %v1377, %v995
      %v1379 = vadd.f32 %v1378, %v996
      %v1380 = vadd.f32 %v1379, %v997
      %v1381 = vadd.f32 %v1380, %v998
      %v1382 = vadd.f32 %v1381, %v999
      %v1383 = vadd.f32 %v1382, %v1000
      %v1384 = vadd.f32 %v1383, %v1001
      %v1385 = vadd.f32 %v1384, %v1002
      %v1386 = vadd.f32 %v1385, %v1003
      %v1387 = vadd.f32 %v1386, %v1004
      %v1388 = vadd.f32 %v1387, %v1005
      %v1389 = vadd.f32 %v1388, %v1006
      %v1390 = vadd.f32 %v1389, %v1007
      %v1391 = vadd.f32 %v1390, %v1008
      %v1392 = vadd.f32 %v1391, %v1009
      %v1393 = vadd.f32 %v1392, %v1010
      %v1394 = vadd.f32 %v1393, %v1011
      %v1395 = vadd.f32 %v1394, %v1012
      %v1396 = vadd.f32 %v1395, %v1013
      %v1397 = vadd.f32 %v1396, %v1014
      %v1398 = vadd.f32 %v1397, %v1015
      %v1399 = vadd.f32 %v1398, %v1016
      %v1400 = vadd.f32 %v1399, %v1017
      %v1401 = vadd.f32 %v1400, %v1018
      %v1402 = vadd.f32 %v1401, %v1019
      %v1403 = vadd.f32 %v1402, %v1020
      %v1404 = vadd.f32 %v1403, %v1021
      %v1405 = vadd.f32 %v1404, %v1022
      %v1406 = vadd.f32 %v1405, %v1023
      %v1407 = vadd.f32 %v1406, %v1024
      %v1408 = vadd.f32 %v1407, %v1025
      %v1409 = vadd.f32 %v1408, %v1026
      %v1410 = vadd.f32 %v1409, %v1027
      %v1411 = vadd.f32 %v1410, %v1028
      %v1412 = vadd.f32 %v1411, %v1029
      %v1413 = vadd.f32 %v1412, %v1030
      %v1414 = vadd.f32 %v1413, %v1031
      %v1415 = vadd.f32 %v1414, %v1032
      %v1416 = vadd.f32 %v1415, %v1033
      %v1417 = vadd.f32 %v1416, %v1034
      %v1418 = vadd.f32 %v1417, %v1035
      %v1419 = vadd.f32 %v1418, %v1036
      %v1420 = vadd.f32 %v1419, %v1037
      %v1421 = vadd.f32 %v1420, %v1038
      %v1422 = vadd.f32 %v1421, %v1039
      %v1423 = vadd.f32 %v1422, %v1040
      %v1424 = vadd.f32 %v1423, %v1041
      %v1425 = vadd.f32 %v1424, %v1042
      %v1426 = vadd.f32 %v1425, %v1043
      %v1427 = vadd.f32 %v1426, %v1044
      %v1428 = vrot.slane %v1427, 4
      %v1429 = vadd.f32 %v1427, %v1428
      %v1430 = vrot.slane %v1429, 2
      %v1431 = vadd.f32 %v1429, %v1430
      %v1432 = vrot.slane %v1431, 1
      %v1433 = vadd.f32 %v1431, %v1432
      %1434 = vst [vmem:[#allocation9] sm:$0x1] %v1433
      %v1435 = vmul.f32 %v981, %v981
      %v1436 = vmul.f32 %v982, %v982
      %v1437 = vmul.f32 %v983, %v983
      %v1438 = vmul.f32 %v984, %v984
      %v1439 = vmul.f32 %v985, %v985
      %v1440 = vmul.f32 %v986, %v986
      %v1441 = vmul.f32 %v987, %v987
      %v1442 = vmul.f32 %v988, %v988
      %v1443 = vmul.f32 %v989, %v989
      %v1444 = vmul.f32 %v990, %v990
      %v1445 = vmul.f32 %v991, %v991
      %v1446 = vmul.f32 %v992, %v992
      %v1447 = vmul.f32 %v993, %v993
      %v1448 = vmul.f32 %v994, %v994
      %v1449 = vmul.f32 %v995, %v995
      %v1450 = vmul.f32 %v996, %v996
      %v1451 = vmul.f32 %v997, %v997
      %v1452 = vmul.f32 %v998, %v998
      %v1453 = vmul.f32 %v999, %v999
      %v1454 = vmul.f32 %v1000, %v1000
      %v1455 = vmul.f32 %v1001, %v1001
      %v1456 = vmul.f32 %v1002, %v1002
      %v1457 = vmul.f32 %v1003, %v1003
      %v1458 = vmul.f32 %v1004, %v1004
      %v1459 = vmul.f32 %v1005, %v1005
      %v1460 = vmul.f32 %v1006, %v1006
      %v1461 = vmul.f32 %v1007, %v1007
      %v1462 = vmul.f32 %v1008, %v1008
      %v1463 = vmul.f32 %v1009, %v1009
      %v1464 = vmul.f32 %v1010, %v1010
      %v1465 = vmul.f32 %v1011, %v1011
      %v1466 = vmul.f32 %v1012, %v1012
      %v1467 = vmul.f32 %v1013, %v1013
      %v1468 = vmul.f32 %v1014, %v1014
      %v1469 = vmul.f32 %v1015, %v1015
      %v1470 = vmul.f32 %v1016, %v1016
      %v1471 = vmul.f32 %v1017, %v1017
      %v1472 = vmul.f32 %v1018, %v1018
      %v1473 = vmul.f32 %v1019, %v1019
      %v1474 = vmul.f32 %v1020, %v1020
      %v1475 = vmul.f32 %v1021, %v1021
      %v1476 = vmul.f32 %v1022, %v1022
      %v1477 = vmul.f32 %v1023, %v1023
      %v1478 = vmul.f32 %v1024, %v1024
      %v1479 = vmul.f32 %v1025, %v1025
      %v1480 = vmul.f32 %v1026, %v1026
      %v1481 = vmul.f32 %v1027, %v1027
      %v1482 = vmul.f32 %v1028, %v1028
      %v1483 = vmul.f32 %v1029, %v1029
      %v1484 = vmul.f32 %v1030, %v1030
      %v1485 = vmul.f32 %v1031, %v1031
      %v1486 = vmul.f32 %v1032, %v1032
      %v1487 = vmul.f32 %v1033, %v1033
      %v1488 = vmul.f32 %v1034, %v1034
      %v1489 = vmul.f32 %v1035, %v1035
      %v1490 = vmul.f32 %v1036, %v1036
      %v1491 = vmul.f32 %v1037, %v1037
      %v1492 = vmul.f32 %v1038, %v1038
      %v1493 = vmul.f32 %v1039, %v1039
      %v1494 = vmul.f32 %v1040, %v1040
      %v1495 = vmul.f32 %v1041, %v1041
      %v1496 = vmul.f32 %v1042, %v1042
      %v1497 = vmul.f32 %v1043, %v1043
      %v1498 = vmul.f32 %v1044, %v1044
      %v1499 = vadd.f32 %v1435, %v1436
      %v1500 = vadd.f32 %v1499, %v1437
      %v1501 = vadd.f32 %v1500, %v1438
      %v1502 = vadd.f32 %v1501, %v1439
      %v1503 = vadd.f32 %v1502, %v1440
      %v1504 = vadd.f32 %v1503, %v1441
      %v1505 = vadd.f32 %v1504, %v1442
      %v1506 = vadd.f32 %v1505, %v1443
      %v1507 = vadd.f32 %v1506, %v1444
      %v1508 = vadd.f32 %v1507, %v1445
      %v1509 = vadd.f32 %v1508, %v1446
      %v1510 = vadd.f32 %v1509, %v1447
      %v1511 = vadd.f32 %v1510, %v1448
      %v1512 = vadd.f32 %v1511, %v1449
      %v1513 = vadd.f32 %v1512, %v1450
      %v1514 = vadd.f32 %v1513, %v1451
      %v1515 = vadd.f32 %v1514, %v1452
      %v1516 = vadd.f32 %v1515, %v1453
      %v1517 = vadd.f32 %v1516, %v1454
      %v1518 = vadd.f32 %v1517, %v1455
      %v1519 = vadd.f32 %v1518, %v1456
      %v1520 = vadd.f32 %v1519, %v1457
      %v1521 = vadd.f32 %v1520, %v1458
      %v1522 = vadd.f32 %v1521, %v1459
      %v1523 = vadd.f32 %v1522, %v1460
      %v1524 = vadd.f32 %v1523, %v1461
      %v1525 = vadd.f32 %v1524, %v1462
      %v1526 = vadd.f32 %v1525, %v1463
      %v1527 = vadd.f32 %v1526, %v1464
      %v1528 = vadd.f32 %v1527, %v1465
      %v1529 = vadd.f32 %v1528, %v1466
      %v1530 = vadd.f32 %v1529, %v1467
      %v1531 = vadd.f32 %v1530, %v1468
      %v1532 = vadd.f32 %v1531, %v1469
      %v1533 = vadd.f32 %v1532, %v1470
      %v1534 = vadd.f32 %v1533, %v1471
      %v1535 = vadd.f32 %v1534, %v1472
      %v1536 = vadd.f32 %v1535, %v1473
      %v1537 = vadd.f32 %v1536, %v1474
      %v1538 = vadd.f32 %v1537, %v1475
      %v1539 = vadd.f32 %v1538, %v1476
      %v1540 = vadd.f32 %v1539, %v1477
      %v1541 = vadd.f32 %v1540, %v1478
      %v1542 = vadd.f32 %v1541, %v1479
      %v1543 = vadd.f32 %v1542, %v1480
      %v1544 = vadd.f32 %v1543, %v1481
      %v1545 = vadd.f32 %v1544, %v1482
      %v1546 = vadd.f32 %v1545, %v1483
      %v1547 = vadd.f32 %v1546, %v1484
      %v1548 = vadd.f32 %v1547, %v1485
      %v1549 = vadd.f32 %v1548, %v1486
      %v1550 = vadd.f32 %v1549, %v1487
      %v1551 = vadd.f32 %v1550, %v1488
      %v1552 = vadd.f32 %v1551, %v1489
      %v1553 = vadd.f32 %v1552, %v1490
      %v1554 = vadd.f32 %v1553, %v1491
      %v1555 = vadd.f32 %v1554, %v1492
      %v1556 = vadd.f32 %v1555, %v1493
      %v1557 = vadd.f32 %v1556, %v1494
      %v1558 = vadd.f32 %v1557, %v1495
      %v1559 = vadd.f32 %v1558, %v1496
      %v1560 = vadd.f32 %v1559, %v1497
      %v1561 = vadd.f32 %v1560, %v1498
      %v1562 = vrot.slane %v1561, 4
      %v1563 = vadd.f32 %v1561, %v1562
      %v1564 = vrot.slane %v1563, 2
      %v1565 = vadd.f32 %v1563, %v1564
      %v1566 = vrot.slane %v1565, 1
      %v1567 = vadd.f32 %v1565, %v1566
      %1568 = vst [vmem:[#allocation11] sm:$0x1] %v1567
    $region25: #{tpu_custom_call.1} parent=1 // pred_fallthru
      _
    // Predicated region
    $region26: #{tpu_custom_call.1} parent=1 // pred_check
      _
    $region27: #{tpu_custom_call.1} parent=1 // pred_check_branch
      %1570 = sbr.rel (0) target = $region29
    $region28: #{tpu_custom_call.1} parent=1 // pred_region
      %s1572 = ssub.s32 4096, 4096
      %1573 = vsyncadd [#allocation5], %s1572
      %s1574 = sshll.u32 [#allocation8], 4
      %s1575 = int_to_ptr.vmem [resolvable:$true] %s1574
      %1580 = dma.vmem_to_hbm [thread:$0]  %s1575, 4096, %s2, [#allocation5], 64, 64, 4
    $region29: #{tpu_custom_call.1} parent=1 // pred_fallthru
      _
    // Predicated region
    $region30: #{tpu_custom_call.1} parent=1 // pred_check
      _
    $region31: #{tpu_custom_call.1} parent=1 // pred_check_branch
      %1582 = sbr.rel (0) target = $region33
    $region32: #{tpu_custom_call.1} parent=1 // pred_region
      %s1584 = ssub.s32 16, 16
      %1585 = vsyncadd [#allocation10], %s1584
      %s1587 = sshll.u32 [#allocation9], 4
      %s1588 = int_to_ptr.vmem [resolvable:$true] %s1587
      %1590 = dma.vmem_to_hbm [thread:$0]  %s1588, 16, %s3, [#allocation10]
    $region33: #{tpu_custom_call.1} parent=1 // pred_fallthru
      _
    // Predicated region
    $region34: #{tpu_custom_call.1} parent=1 // pred_check
      _
    $region35: #{tpu_custom_call.1} parent=1 // pred_check_branch
      %1592 = sbr.rel (0) target = $region37
    $region36: #{tpu_custom_call.1} parent=1 // pred_region
      %s1594 = ssub.s32 16, 16
      %1595 = vsyncadd [#allocation10], %s1594
      %s1597 = sshll.u32 [#allocation11], 4
      %s1598 = int_to_ptr.vmem [resolvable:$true] %s1597
      %1600 = dma.vmem_to_hbm [thread:$0]  %s1598, 16, %s4, [#allocation10]
    $region37: #{tpu_custom_call.1} parent=1 // pred_fallthru
      _
    // Predicated region
    $region38: #{tpu_custom_call.1} parent=1 // pred_check
      _
    $region39: #{tpu_custom_call.1} parent=1 // pred_check_branch
      %1602 = sbr.rel (0) target = $region41
    $region40: #{tpu_custom_call.1} parent=1 // pred_region
      %1603 = dma.done [#allocation5], 4096
    $region41: #{tpu_custom_call.1} parent=1 // pred_fallthru
      _
    // Predicated region
    $region42: #{tpu_custom_call.1} parent=1 // pred_check
      _
    $region43: #{tpu_custom_call.1} parent=1 // pred_check_branch
      %1605 = sbr.rel (0) target = $region45
    $region44: #{tpu_custom_call.1} parent=1 // pred_region
      %1606 = dma.done [#allocation10], 16
    $region45: #{tpu_custom_call.1} parent=1 // pred_fallthru
      _
    // Predicated region
    $region46: #{tpu_custom_call.1} parent=1 // pred_check
      _
    $region47: #{tpu_custom_call.1} parent=1 // pred_check_branch
      %1608 = sbr.rel (0) target = $region49
    $region48: #{tpu_custom_call.1} parent=1 // pred_region
      %1609 = dma.done [#allocation10], 16
    $region49: #{tpu_custom_call.1} parent=1 // pred_fallthru
      _
    %1610 = vsyncpa [#allocation4], 1
    %1611 = vsyncpa [#allocation7], 1
    %1612 = vsyncpa [#allocation5], 1
    %1613 = vsyncpa [#allocation10], 1

</llo_original>
